<compile_context>
chip_gen: v7x
topology: tpu7x:2x2x1
jax: 0.10.0
libtpu: 0.0.40
codegen_flags: <defaults>
</compile_context>

<pallas_src>
import functools

import numpy as np
import jax
import jax.numpy as jnp
from jax.experimental import pallas as pl
from jax.experimental.pallas import tpu as pltpu


LANE = 128      # feature dim padded to the 128-lane granule
SUBLANE = 8     # per-level row blocks padded to the 8-sublane granule


def _round_up(x, m):
    return ((x + m - 1) // m) * m


# ----------------------------- Pallas kernel ------------------------------- #

def fused_tree_lstm_kernel(levels_per_step,   # static (bound via functools.partial)
                           x_ref,             # [CR, Dp]    bf16  level-ordered embeddings (chunk)
                           sel_ref,           # [CR, LP]    f32   one-hot parent-slot selection
                           w_ref,             # [Dp, 4*Dp]  bf16  input weights (VMEM-resident)
                           u_ref,             # [Dp, 4*Dp]  bf16  recurrent weights (VMEM-resident)
                           b_ref,             # [1, 4*Dp]   f32   bias
                           h_out_ref,         # [CR, Dp]    f32   hidden states for this chunk
                           xproj,             # VMEM scratch [CR, 4*Dp] f32
                           hc_prev):          # VMEM scratch [LP, 2*Dp] f32 (prev level h|c)
    lp = hc_prev.shape[0]
    d = h_out_ref.shape[-1]

    # Root level (first chunk) has no predecessors: start from zero state.
    @pl.when(pl.program_id(0) == 0)
    def _():
        hc_prev[...] = jnp.zeros_like(hc_prev)

    # Fused input projection for the whole chunk: one bf16 MXU matmul,
    # f32 accumulate, result stays in VMEM (never touches HBM).
    xproj[...] = (
        jnp.dot(x_ref[...], w_ref[...], preferred_element_type=jnp.float32)
        + b_ref[...]
    )

    def level_body(l, carry):
        r0 = pl.multiple_of(l * lp, lp)          # sublane-aligned row offset

        # Parent gather: one-hot rows select the parent's (h|c) from the
        # previous level in a single matmul.  sel is exact 0/1 f32 -> gather
        # is exact for the carried c state; root/pad rows are all-zero.
        sel = sel_ref[pl.ds(r0, lp), :]                              # (LP, LP)
        hc_pred = jnp.dot(sel, hc_prev[...],
                          preferred_element_type=jnp.float32)        # (LP, 2*Dp)
        h_pred = hc_pred[:, :d]
        c_pred = hc_pred[:, d:]

        # z = (x @ W + b) + h_parent @ U  ; bf16 MXU inputs, f32 accumulator.
        z = xproj[pl.ds(r0, lp), :] + jnp.dot(
            h_pred.astype(u_ref.dtype), u_ref[...],
            preferred_element_type=jnp.float32)

        # Gate layout [i | o | u | f]; each gate sits in its own 128-lane slot,
        # so every slice below is 128-lane aligned (pure VPU/EUP work).
        i_g = jax.nn.sigmoid(z[:, 0 * d:1 * d])
        o_g = jax.nn.sigmoid(z[:, 1 * d:2 * d])
        u_g = jnp.tanh(z[:, 2 * d:3 * d])
        f_g = jax.nn.sigmoid(z[:, 3 * d:4 * d])
        c_new = i_g * u_g + f_g * c_pred
        h_new = o_g * jnp.tanh(c_new)

        # Persist for the next (deeper) level and emit this level's output.
        hc_prev[:, :d] = h_new
        hc_prev[:, d:] = c_new
        h_out_ref[pl.ds(r0, lp), :] = h_new
        return carry

    jax.lax.fori_loop(0, levels_per_step, level_body, 0, unroll=True)


# ------------------------------ Pallas wrapper ------------------------------ #

def run_fused_tree_lstm(x_rows_bf16, sel_f32, w_pad, u_pad, b_pad,
                        num_chunks, levels_per_step, level_pad):
    """Single pallas_call over level chunks; state + weights resident in VMEM."""
    n_rows, d_pad = x_rows_bf16.shape
    g = w_pad.shape[1]
    chunk_rows = levels_per_step * level_pad
    kernel = functools.partial(fused_tree_lstm_kernel, levels_per_step)
    return pl.pallas_call(
        kernel,
        out_shape=jax.ShapeDtypeStruct((n_rows, d_pad), jnp.float32),
        grid_spec=pltpu.PrefetchScalarGridSpec(
            num_scalar_prefetch=0,
            grid=(num_chunks,),
            in_specs=[
                pl.BlockSpec((chunk_rows, d_pad), lambda c: (c, 0)),     # x chunk
                pl.BlockSpec((chunk_rows, level_pad), lambda c: (c, 0)),  # sel chunk
                pl.BlockSpec((d_pad, g), lambda c: (0, 0)),               # W_all (loaded once)
                pl.BlockSpec((d_pad, g), lambda c: (0, 0)),               # U_all (loaded once)
                pl.BlockSpec((1, g), lambda c: (0, 0)),                   # bias
            ],
            out_specs=pl.BlockSpec((chunk_rows, d_pad), lambda c: (c, 0)),
            scratch_shapes=[
                pltpu.VMEM((chunk_rows, g), jnp.float32),         # fused xproj (chunk)
                pltpu.VMEM((level_pad, 2 * d_pad), jnp.float32),  # h|c of previous level
            ],
        ),
        compiler_params=pltpu.CompilerParams(
            dimension_semantics=("arbitrary",),        # sequential recurrence
            vmem_limit_bytes=48 * 1024 * 1024),        # explicit; safe on v7x 64 MiB
    )(x_rows_bf16, sel_f32, w_pad, u_pad, b_pad)


# --------------------------- Encoder forward (glue) -------------------------- #

def ast_tree_lstm_encode(ast_nodes_embeddings, parents_np, levels, params,
                         direction='root_to_leaves'):
    """Forward of ASTTreeLSTMEncoder (norm_params=None, eval mode)."""
    assert ast_nodes_embeddings.ndim == 2
    assert direction == 'root_to_leaves'
    # TODO(synk): 'leaves_to_root' (child-sum over multiple children) not implemented.
    n, d = ast_nodes_embeddings.shape
    d_pad = _round_up(d, LANE)
    num_levels = len(levels)
    level_pad = _round_up(max(len(lv) for lv in levels), SUBLANE)

    # Levels per grid step: amortize the fixed per-step cost while keeping the
    # chunk (rows x 4*d_pad f32 scratch) comfortably inside VMEM.
    levels_per_step = max(1, min(num_levels, 512 // level_pad))
    num_chunks = -(-num_levels // levels_per_step)
    num_levels_pad = num_chunks * levels_per_step     # trailing pad levels only
    n_rows = num_levels_pad * level_pad

    # ---- host-side static tree topology -> level-ordered, padded layout ----
    new_pos = np.full(n, -1, np.int64)
    for l, nodes in enumerate(levels):
        for j, node in enumerate(nodes):
            new_pos[node] = l * level_pad + j

    # One-hot parent-slot selection matrix (parents live exactly one level up).
    # Root rows, pad rows and pad levels stay all-zero -> zero predecessor state.
    sel = np.zeros((n_rows, level_pad), np.float32)
    for l, nodes in enumerate(levels):
        for j, node in enumerate(nodes):
            p = int(parents_np[node])
            if p >= 0:
                slot = int(new_pos[p] - (l - 1) * level_pad)
                sel[l * level_pad + j, slot] = 1.0

    # Level-ordered, lane/sublane-padded input rows (zeros in padded slots).
    x_rows = np.zeros((n_rows, d_pad), np.float32)
    x_rows[new_pos, :d] = np.asarray(ast_nodes_embeddings, np.float32)

    # ---- pad gate-concatenated weights so each gate owns a 128-lane slot ----
    w_bf = params['w_all'].astype(jnp.bfloat16)
    u_bf = params['u_all'].astype(jnp.bfloat16)
    b_f32 = params['b_all'].astype(jnp.float32)

    def pad_gates_mat(m, dtype):
        blocks = []
        for gi in range(4):
            blk = m[:, gi * d:(gi + 1) * d]
            blocks.append(jnp.pad(blk, ((0, d_pad - d), (0, d_pad - d))))
        return jnp.concatenate(blocks, axis=1).astype(dtype)

    def pad_gates_vec(v):
        segs = []
        for gi in range(4):
            segs.append(jnp.pad(v[gi * d:(gi + 1) * d], (0, d_pad - d)))
        return jnp.concatenate(segs).astype(jnp.float32)

    w_pad = pad_gates_mat(w_bf, jnp.bfloat16)          # (d_pad, 4*d_pad)
    u_pad = pad_gates_mat(u_bf, jnp.bfloat16)          # (d_pad, 4*d_pad)
    b_pad = pad_gates_vec(b_f32).reshape(1, 4 * d_pad)  # (1, 4*d_pad)

    # ---- single fused kernel: projection + level recurrence ----
    h_lvl = run_fused_tree_lstm(
        jnp.asarray(x_rows, jnp.bfloat16),
        jnp.asarray(sel),
        w_pad, u_pad, b_pad,
        num_chunks, levels_per_step, level_pad)

    # Un-permute back to original node order and drop the feature padding.
    # (norm is None -> return TreeLSTM hidden states directly)
    return h_lvl[jnp.asarray(new_pos, jnp.int32), :d]


# ------------------------------ Pure-JAX reference --------------------------- #

def reference_encode(x, parents_np, levels, params):
    """Per-node f32 reference using the same bf16-quantized weights the kernel sees."""
    n, d = x.shape
    w = params['w_all'].astype(jnp.bfloat16).astype(jnp.float32)
    u = params['u_all'].astype(jnp.bfloat16).astype(jnp.float32)
    b = params['b_all'].astype(jnp.float32)
    xproj = x @ w + b
    h = jnp.zeros((n, d), jnp.float32)
    c = jnp.zeros((n, d), jnp.float32)
    for lvl_nodes in levels:
        for node in lvl_nodes:
            par = int(parents_np[node])
            hp = h[par] if par >= 0 else jnp.zeros((d,), jnp.float32)
            cp = c[par] if par >= 0 else jnp.zeros((d,), jnp.float32)
            z = xproj[node] + hp @ u
            i_g = jax.nn.sigmoid(z[0 * d:1 * d])
            o_g = jax.nn.sigmoid(z[1 * d:2 * d])
            u_g = jnp.tanh(z[2 * d:3 * d])
            f_g = jax.nn.sigmoid(z[3 * d:4 * d])
            cn = i_g * u_g + f_g * cp
            h = h.at[node].set(o_g * jnp.tanh(cn))
            c = c.at[node].set(cn)
    return h


# ----------------------------------- main ----------------------------------- #

if __name__ == "__main__":
    D = 32   # ast_node_embedding_dim
    N = 16   # number of AST nodes in the batch graph

    # Deterministic synthetic AST (parent pointers, -1 = root).
    parents_np = np.array(
        [-1, 0, 0, 1, 1, 2, 2, 3, 3, 4, 5, 6, 7, 8, 9, 10], dtype=np.int32
    )
    # Group nodes by depth (root_to_leaves processing order).
    depth = np.zeros(N, dtype=np.int32)
    for v in range(1, N):
        depth[v] = depth[parents_np[v]] + 1
    levels = [list(map(int, np.nonzero(depth == dl)[0]))
              for dl in range(int(depth.max()) + 1)]

    # Deterministic parameters: W/U for the 4 gates concatenated [i|o|u|f].
    key = jax.random.PRNGKey(0)
    k_x, k_w, k_u, k_b = jax.random.split(key, 4)
    scale = 1.0 / np.sqrt(D)
    params = {
        'w_all': jax.random.normal(k_w, (D, 4 * D), jnp.float32) * scale,
        'u_all': jax.random.normal(k_u, (D, 4 * D), jnp.float32) * scale,
        'b_all': jax.random.normal(k_b, (4 * D,), jnp.float32) * 0.01,
    }
    ast_nodes_embeddings = jax.random.normal(k_x, (N, D), jnp.float32)

    out = ast_tree_lstm_encode(ast_nodes_embeddings, parents_np, levels, params,
                               direction='root_to_leaves')
    out = jax.block_until_ready(out)
    assert out.shape == ast_nodes_embeddings.shape

    ref = jax.block_until_ready(
        reference_encode(ast_nodes_embeddings, parents_np, levels, params)
    )
    # bf16 MXU inputs in the kernel vs f32 activations in the reference.
    np.testing.assert_allclose(np.asarray(out), np.asarray(ref),
                               rtol=2e-2, atol=2e-2)
    print("KERNEL_OK")
</pallas_src>

<mosaic_0001>
module attributes {stable_mosaic.version = 11 : i64} {
  func.func @fused_tree_lstm_kernel(%arg0: i32, %arg1: memref<40x128xbf16, #tpu.memory_space<vmem>>, %arg2: memref<40x8xf32, #tpu.memory_space<vmem>>, %arg3: memref<128x512xbf16, #tpu.memory_space<vmem>>, %arg4: memref<128x512xbf16, #tpu.memory_space<vmem>>, %arg5: memref<1x512xf32, #tpu.memory_space<vmem>>, %arg6: memref<40x128xf32, #tpu.memory_space<vmem>>, %arg7: memref<40x512xf32, #tpu.memory_space<vmem>>, %arg8: memref<8x256xf32, #tpu.memory_space<vmem>>) attributes {dimension_semantics = [#tpu.dimension_semantics<arbitrary>], iteration_bounds = array<i64: 1>, scalar_prefetch = 0 : i64, scratch_operands = 2 : i64, tpu.core_type = #tpu.core_type<tc>, window_params = [{transform_indices = @transform_0, window_bounds = array<i64: 40, 128>}, {transform_indices = @transform_1, window_bounds = array<i64: 40, 8>}, {pipeline_mode = #tpu.pipeline_mode<synchronous>, transform_indices = @transform_2, window_bounds = array<i64: 128, 512>}, {pipeline_mode = #tpu.pipeline_mode<synchronous>, transform_indices = @transform_3, window_bounds = array<i64: 128, 512>}, {pipeline_mode = #tpu.pipeline_mode<synchronous>, transform_indices = @transform_4, window_bounds = array<i64: 1, 512>}, {transform_indices = @transform_5, window_bounds = array<i64: 40, 128>}]} {
    %c0_i32 = arith.constant 0 : i32
    %0 = arith.cmpi eq, %arg0, %c0_i32 : i32
    %1 = arith.extui %0 : i1 to i32
    %c0_i32_0 = arith.constant 0 : i32
    %2 = arith.cmpi ne, %1, %c0_i32_0 : i32
    scf.if %2 {
      %cst_92 = arith.constant 0.000000e+00 : f32
      %225 = vector.broadcast %cst_92 : f32 to vector<8x256xf32>
      %c0_93 = arith.constant 0 : index
      %c0_94 = arith.constant 0 : index
      %226 = vector.load %arg8[%c0_93, %c0_94] : memref<8x256xf32, #tpu.memory_space<vmem>>, vector<8x256xf32>
      tpu.vector_store %arg8[%c0_93, %c0_94], %225 {strides = array<i32>} : memref<8x256xf32, #tpu.memory_space<vmem>>, vector<8x256xf32>,
    } else {
    }
    %c0 = arith.constant 0 : index
    %c0_1 = arith.constant 0 : index
    %3 = vector.load %arg1[%c0, %c0_1] : memref<40x128xbf16, #tpu.memory_space<vmem>>, vector<40x128xbf16>
    %c0_2 = arith.constant 0 : index
    %c0_3 = arith.constant 0 : index
    %4 = vector.load %arg3[%c0_2, %c0_3] : memref<128x512xbf16, #tpu.memory_space<vmem>>, vector<128x512xbf16>
    %cst = arith.constant dense<0.000000e+00> : vector<40x512xf32>
    %5 = tpu.matmul %3, %4, %cst {dimension_numbers = #tpu.dot_dimension_numbers<[1], [0], [0], [1], [0, 0, 1, 1], [], []>} : vector<40x128xbf16>, vector<128x512xbf16>, vector<40x512xf32> -> vector<40x512xf32>
    %c0_4 = arith.constant 0 : index
    %c0_5 = arith.constant 0 : index
    %6 = vector.load %arg5[%c0_4, %c0_5] : memref<1x512xf32, #tpu.memory_space<vmem>>, vector<1x512xf32>
    %7 = vector.broadcast %6 : vector<1x512xf32> to vector<40x512xf32>
    %8 = arith.addf %5, %7 : vector<40x512xf32>
    %c0_6 = arith.constant 0 : index
    %c0_7 = arith.constant 0 : index
    %9 = vector.load %arg7[%c0_6, %c0_7] : memref<40x512xf32, #tpu.memory_space<vmem>>, vector<40x512xf32>
    tpu.vector_store %arg7[%c0_6, %c0_7], %8 {strides = array<i32>} : memref<40x512xf32, #tpu.memory_space<vmem>>, vector<40x512xf32>,
    %c0_i32_8 = arith.constant 0 : i32
    %c8_i32 = arith.constant 8 : i32
    %10 = arith.muli %c0_i32_8, %c8_i32 : i32
    %11 = tpu.assume_multiple %10, 8 : i32
    %12 = arith.index_cast %11 : i32 to index
    %c0_9 = arith.constant 0 : index
    %13 = vector.load %arg2[%12, %c0_9] : memref<40x8xf32, #tpu.memory_space<vmem>>, vector<8x8xf32>
    %c0_10 = arith.constant 0 : index
    %c0_11 = arith.constant 0 : index
    %14 = vector.load %arg8[%c0_10, %c0_11] : memref<8x256xf32, #tpu.memory_space<vmem>>, vector<8x256xf32>
    %cst_12 = arith.constant dense<0.000000e+00> : vector<8x256xf32>
    %15 = tpu.matmul %13, %14, %cst_12 {dimension_numbers = #tpu.dot_dimension_numbers<[1], [0], [0], [1], [0, 0, 1, 1], [], []>} : vector<8x8xf32>, vector<8x256xf32>, vector<8x256xf32> -> vector<8x256xf32>
    %16 = vector.extract_strided_slice %15 {offsets = [0, 0], sizes = [8, 128], strides = [1, 1]} : vector<8x256xf32> to vector<8x128xf32>
    %17 = vector.extract_strided_slice %15 {offsets = [0, 128], sizes = [8, 128], strides = [1, 1]} : vector<8x256xf32> to vector<8x128xf32>
    %18 = arith.index_cast %11 : i32 to index
    %c0_13 = arith.constant 0 : index
    %19 = vector.load %arg7[%18, %c0_13] : memref<40x512xf32, #tpu.memory_space<vmem>>, vector<8x512xf32>
    %20 = arith.truncf %16 : vector<8x128xf32> to vector<8x128xbf16>
    %c0_14 = arith.constant 0 : index
    %c0_15 = arith.constant 0 : index
    %21 = vector.load %arg4[%c0_14, %c0_15] : memref<128x512xbf16, #tpu.memory_space<vmem>>, vector<128x512xbf16>
    %cst_16 = arith.constant dense<0.000000e+00> : vector<8x512xf32>
    %22 = tpu.matmul %20, %21, %cst_16 {dimension_numbers = #tpu.dot_dimension_numbers<[1], [0], [0], [1], [0, 0, 1, 1], [], []>} : vector<8x128xbf16>, vector<128x512xbf16>, vector<8x512xf32> -> vector<8x512xf32>
    %23 = arith.addf %19, %22 : vector<8x512xf32>
    %24 = vector.extract_strided_slice %23 {offsets = [0, 0], sizes = [8, 128], strides = [1, 1]} : vector<8x512xf32> to vector<8x128xf32>
    %25 = arith.negf %24 : vector<8x128xf32>
    %26 = math.exp %25 : vector<8x128xf32>
    %cst_17 = arith.constant 1.000000e+00 : f32
    %27 = vector.broadcast %cst_17 : f32 to vector<8x128xf32>
    %28 = arith.addf %27, %26 : vector<8x128xf32>
    %29 = arith.divf %27, %28 : vector<8x128xf32>
    %30 = vector.extract_strided_slice %23 {offsets = [0, 128], sizes = [8, 128], strides = [1, 1]} : vector<8x512xf32> to vector<8x128xf32>
    %31 = arith.negf %30 : vector<8x128xf32>
    %32 = math.exp %31 : vector<8x128xf32>
    %cst_18 = arith.constant 1.000000e+00 : f32
    %33 = vector.broadcast %cst_18 : f32 to vector<8x128xf32>
    %34 = arith.addf %33, %32 : vector<8x128xf32>
    %35 = arith.divf %33, %34 : vector<8x128xf32>
    %36 = vector.extract_strided_slice %23 {offsets = [0, 256], sizes = [8, 128], strides = [1, 1]} : vector<8x512xf32> to vector<8x128xf32>
    %37 = math.tanh %36 : vector<8x128xf32>
    %38 = vector.extract_strided_slice %23 {offsets = [0, 384], sizes = [8, 128], strides = [1, 1]} : vector<8x512xf32> to vector<8x128xf32>
    %39 = arith.negf %38 : vector<8x128xf32>
    %40 = math.exp %39 : vector<8x128xf32>
    %cst_19 = arith.constant 1.000000e+00 : f32
    %41 = vector.broadcast %cst_19 : f32 to vector<8x128xf32>
    %42 = arith.addf %41, %40 : vector<8x128xf32>
    %43 = arith.divf %41, %42 : vector<8x128xf32>
    %44 = arith.mulf %29, %37 : vector<8x128xf32>
    %45 = arith.mulf %43, %17 : vector<8x128xf32>
    %46 = arith.addf %44, %45 : vector<8x128xf32>
    %47 = math.tanh %46 : vector<8x128xf32>
    %48 = arith.mulf %35, %47 : vector<8x128xf32>
    %c0_20 = arith.constant 0 : index
    %c0_21 = arith.constant 0 : index
    %49 = vector.load %arg8[%c0_20, %c0_21] : memref<8x256xf32, #tpu.memory_space<vmem>>, vector<8x128xf32>
    tpu.vector_store %arg8[%c0_20, %c0_21], %48 {strides = array<i32>} : memref<8x256xf32, #tpu.memory_space<vmem>>, vector<8x128xf32>,
    %c0_22 = arith.constant 0 : index
    %c128 = arith.constant 128 : index
    %50 = vector.load %arg8[%c0_22, %c128] : memref<8x256xf32, #tpu.memory_space<vmem>>, vector<8x128xf32>
    tpu.vector_store %arg8[%c0_22, %c128], %46 {strides = array<i32>} : memref<8x256xf32, #tpu.memory_space<vmem>>, vector<8x128xf32>,
    %51 = arith.index_cast %11 : i32 to index
    %c0_23 = arith.constant 0 : index
    %52 = vector.load %arg6[%51, %c0_23] : memref<40x128xf32, #tpu.memory_space<vmem>>, vector<8x128xf32>
    tpu.vector_store %arg6[%51, %c0_23], %48 {strides = array<i32>} : memref<40x128xf32, #tpu.memory_space<vmem>>, vector<8x128xf32>,
    %c1_i32 = arith.constant 1 : i32
    %c8_i32_24 = arith.constant 8 : i32
    %53 = arith.muli %c1_i32, %c8_i32_24 : i32
    %54 = tpu.assume_multiple %53, 8 : i32
    %55 = arith.index_cast %54 : i32 to index
    %c0_25 = arith.constant 0 : index
    %56 = vector.load %arg2[%55, %c0_25] : memref<40x8xf32, #tpu.memory_space<vmem>>, vector<8x8xf32>
    %c0_26 = arith.constant 0 : index
    %c0_27 = arith.constant 0 : index
    %57 = vector.load %arg8[%c0_26, %c0_27] : memref<8x256xf32, #tpu.memory_space<vmem>>, vector<8x256xf32>
    %cst_28 = arith.constant dense<0.000000e+00> : vector<8x256xf32>
    %58 = tpu.matmul %56, %57, %cst_28 {dimension_numbers = #tpu.dot_dimension_numbers<[1], [0], [0], [1], [0, 0, 1, 1], [], []>} : vector<8x8xf32>, vector<8x256xf32>, vector<8x256xf32> -> vector<8x256xf32>
    %59 = vector.extract_strided_slice %58 {offsets = [0, 0], sizes = [8, 128], strides = [1, 1]} : vector<8x256xf32> to vector<8x128xf32>
    %60 = vector.extract_strided_slice %58 {offsets = [0, 128], sizes = [8, 128], strides = [1, 1]} : vector<8x256xf32> to vector<8x128xf32>
    %61 = arith.index_cast %54 : i32 to index
    %c0_29 = arith.constant 0 : index
    %62 = vector.load %arg7[%61, %c0_29] : memref<40x512xf32, #tpu.memory_space<vmem>>, vector<8x512xf32>
    %63 = arith.truncf %59 : vector<8x128xf32> to vector<8x128xbf16>
    %c0_30 = arith.constant 0 : index
    %c0_31 = arith.constant 0 : index
    %64 = vector.load %arg4[%c0_30, %c0_31] : memref<128x512xbf16, #tpu.memory_space<vmem>>, vector<128x512xbf16>
    %cst_32 = arith.constant dense<0.000000e+00> : vector<8x512xf32>
    %65 = tpu.matmul %63, %64, %cst_32 {dimension_numbers = #tpu.dot_dimension_numbers<[1], [0], [0], [1], [0, 0, 1, 1], [], []>} : vector<8x128xbf16>, vector<128x512xbf16>, vector<8x512xf32> -> vector<8x512xf32>
    %66 = arith.addf %62, %65 : vector<8x512xf32>
    %67 = vector.extract_strided_slice %66 {offsets = [0, 0], sizes = [8, 128], strides = [1, 1]} : vector<8x512xf32> to vector<8x128xf32>
    %68 = arith.negf %67 : vector<8x128xf32>
    %69 = math.exp %68 : vector<8x128xf32>
    %cst_33 = arith.constant 1.000000e+00 : f32
    %70 = vector.broadcast %cst_33 : f32 to vector<8x128xf32>
    %71 = arith.addf %70, %69 : vector<8x128xf32>
    %72 = arith.divf %70, %71 : vector<8x128xf32>
    %73 = vector.extract_strided_slice %66 {offsets = [0, 128], sizes = [8, 128], strides = [1, 1]} : vector<8x512xf32> to vector<8x128xf32>
    %74 = arith.negf %73 : vector<8x128xf32>
    %75 = math.exp %74 : vector<8x128xf32>
    %cst_34 = arith.constant 1.000000e+00 : f32
    %76 = vector.broadcast %cst_34 : f32 to vector<8x128xf32>
    %77 = arith.addf %76, %75 : vector<8x128xf32>
    %78 = arith.divf %76, %77 : vector<8x128xf32>
    %79 = vector.extract_strided_slice %66 {offsets = [0, 256], sizes = [8, 128], strides = [1, 1]} : vector<8x512xf32> to vector<8x128xf32>
    %80 = math.tanh %79 : vector<8x128xf32>
    %81 = vector.extract_strided_slice %66 {offsets = [0, 384], sizes = [8, 128], strides = [1, 1]} : vector<8x512xf32> to vector<8x128xf32>
    %82 = arith.negf %81 : vector<8x128xf32>
    %83 = math.exp %82 : vector<8x128xf32>
    %cst_35 = arith.constant 1.000000e+00 : f32
    %84 = vector.broadcast %cst_35 : f32 to vector<8x128xf32>
    %85 = arith.addf %84, %83 : vector<8x128xf32>
    %86 = arith.divf %84, %85 : vector<8x128xf32>
    %87 = arith.mulf %72, %80 : vector<8x128xf32>
    %88 = arith.mulf %86, %60 : vector<8x128xf32>
    %89 = arith.addf %87, %88 : vector<8x128xf32>
    %90 = math.tanh %89 : vector<8x128xf32>
    %91 = arith.mulf %78, %90 : vector<8x128xf32>
    %c0_36 = arith.constant 0 : index
    %c0_37 = arith.constant 0 : index
    %92 = vector.load %arg8[%c0_36, %c0_37] : memref<8x256xf32, #tpu.memory_space<vmem>>, vector<8x128xf32>
    tpu.vector_store %arg8[%c0_36, %c0_37], %91 {strides = array<i32>} : memref<8x256xf32, #tpu.memory_space<vmem>>, vector<8x128xf32>,
    %c0_38 = arith.constant 0 : index
    %c128_39 = arith.constant 128 : index
    %93 = vector.load %arg8[%c0_38, %c128_39] : memref<8x256xf32, #tpu.memory_space<vmem>>, vector<8x128xf32>
    tpu.vector_store %arg8[%c0_38, %c128_39], %89 {strides = array<i32>} : memref<8x256xf32, #tpu.memory_space<vmem>>, vector<8x128xf32>,
    %94 = arith.index_cast %54 : i32 to index
    %c0_40 = arith.constant 0 : index
    %95 = vector.load %arg6[%94, %c0_40] : memref<40x128xf32, #tpu.memory_space<vmem>>, vector<8x128xf32>
    tpu.vector_store %arg6[%94, %c0_40], %91 {strides = array<i32>} : memref<40x128xf32, #tpu.memory_space<vmem>>, vector<8x128xf32>,
    %c2_i32 = arith.constant 2 : i32
    %c8_i32_41 = arith.constant 8 : i32
    %96 = arith.muli %c2_i32, %c8_i32_41 : i32
    %97 = tpu.assume_multiple %96, 8 : i32
    %98 = arith.index_cast %97 : i32 to index
    %c0_42 = arith.constant 0 : index
    %99 = vector.load %arg2[%98, %c0_42] : memref<40x8xf32, #tpu.memory_space<vmem>>, vector<8x8xf32>
    %c0_43 = arith.constant 0 : index
    %c0_44 = arith.constant 0 : index
    %100 = vector.load %arg8[%c0_43, %c0_44] : memref<8x256xf32, #tpu.memory_space<vmem>>, vector<8x256xf32>
    %cst_45 = arith.constant dense<0.000000e+00> : vector<8x256xf32>
    %101 = tpu.matmul %99, %100, %cst_45 {dimension_numbers = #tpu.dot_dimension_numbers<[1], [0], [0], [1], [0, 0, 1, 1], [], []>} : vector<8x8xf32>, vector<8x256xf32>, vector<8x256xf32> -> vector<8x256xf32>
    %102 = vector.extract_strided_slice %101 {offsets = [0, 0], sizes = [8, 128], strides = [1, 1]} : vector<8x256xf32> to vector<8x128xf32>
    %103 = vector.extract_strided_slice %101 {offsets = [0, 128], sizes = [8, 128], strides = [1, 1]} : vector<8x256xf32> to vector<8x128xf32>
    %104 = arith.index_cast %97 : i32 to index
    %c0_46 = arith.constant 0 : index
    %105 = vector.load %arg7[%104, %c0_46] : memref<40x512xf32, #tpu.memory_space<vmem>>, vector<8x512xf32>
    %106 = arith.truncf %102 : vector<8x128xf32> to vector<8x128xbf16>
    %c0_47 = arith.constant 0 : index
    %c0_48 = arith.constant 0 : index
    %107 = vector.load %arg4[%c0_47, %c0_48] : memref<128x512xbf16, #tpu.memory_space<vmem>>, vector<128x512xbf16>
    %cst_49 = arith.constant dense<0.000000e+00> : vector<8x512xf32>
    %108 = tpu.matmul %106, %107, %cst_49 {dimension_numbers = #tpu.dot_dimension_numbers<[1], [0], [0], [1], [0, 0, 1, 1], [], []>} : vector<8x128xbf16>, vector<128x512xbf16>, vector<8x512xf32> -> vector<8x512xf32>
    %109 = arith.addf %105, %108 : vector<8x512xf32>
    %110 = vector.extract_strided_slice %109 {offsets = [0, 0], sizes = [8, 128], strides = [1, 1]} : vector<8x512xf32> to vector<8x128xf32>
    %111 = arith.negf %110 : vector<8x128xf32>
    %112 = math.exp %111 : vector<8x128xf32>
    %cst_50 = arith.constant 1.000000e+00 : f32
    %113 = vector.broadcast %cst_50 : f32 to vector<8x128xf32>
    %114 = arith.addf %113, %112 : vector<8x128xf32>
    %115 = arith.divf %113, %114 : vector<8x128xf32>
    %116 = vector.extract_strided_slice %109 {offsets = [0, 128], sizes = [8, 128], strides = [1, 1]} : vector<8x512xf32> to vector<8x128xf32>
    %117 = arith.negf %116 : vector<8x128xf32>
    %118 = math.exp %117 : vector<8x128xf32>
    %cst_51 = arith.constant 1.000000e+00 : f32
    %119 = vector.broadcast %cst_51 : f32 to vector<8x128xf32>
    %120 = arith.addf %119, %118 : vector<8x128xf32>
    %121 = arith.divf %119, %120 : vector<8x128xf32>
    %122 = vector.extract_strided_slice %109 {offsets = [0, 256], sizes = [8, 128], strides = [1, 1]} : vector<8x512xf32> to vector<8x128xf32>
    %123 = math.tanh %122 : vector<8x128xf32>
    %124 = vector.extract_strided_slice %109 {offsets = [0, 384], sizes = [8, 128], strides = [1, 1]} : vector<8x512xf32> to vector<8x128xf32>
    %125 = arith.negf %124 : vector<8x128xf32>
    %126 = math.exp %125 : vector<8x128xf32>
    %cst_52 = arith.constant 1.000000e+00 : f32
    %127 = vector.broadcast %cst_52 : f32 to vector<8x128xf32>
    %128 = arith.addf %127, %126 : vector<8x128xf32>
    %129 = arith.divf %127, %128 : vector<8x128xf32>
    %130 = arith.mulf %115, %123 : vector<8x128xf32>
    %131 = arith.mulf %129, %103 : vector<8x128xf32>
    %132 = arith.addf %130, %131 : vector<8x128xf32>
    %133 = math.tanh %132 : vector<8x128xf32>
    %134 = arith.mulf %121, %133 : vector<8x128xf32>
    %c0_53 = arith.constant 0 : index
    %c0_54 = arith.constant 0 : index
    %135 = vector.load %arg8[%c0_53, %c0_54] : memref<8x256xf32, #tpu.memory_space<vmem>>, vector<8x128xf32>
    tpu.vector_store %arg8[%c0_53, %c0_54], %134 {strides = array<i32>} : memref<8x256xf32, #tpu.memory_space<vmem>>, vector<8x128xf32>,
    %c0_55 = arith.constant 0 : index
    %c128_56 = arith.constant 128 : index
    %136 = vector.load %arg8[%c0_55, %c128_56] : memref<8x256xf32, #tpu.memory_space<vmem>>, vector<8x128xf32>
    tpu.vector_store %arg8[%c0_55, %c128_56], %132 {strides = array<i32>} : memref<8x256xf32, #tpu.memory_space<vmem>>, vector<8x128xf32>,
    %137 = arith.index_cast %97 : i32 to index
    %c0_57 = arith.constant 0 : index
    %138 = vector.load %arg6[%137, %c0_57] : memref<40x128xf32, #tpu.memory_space<vmem>>, vector<8x128xf32>
    tpu.vector_store %arg6[%137, %c0_57], %134 {strides = array<i32>} : memref<40x128xf32, #tpu.memory_space<vmem>>, vector<8x128xf32>,
    %c3_i32 = arith.constant 3 : i32
    %c8_i32_58 = arith.constant 8 : i32
    %139 = arith.muli %c3_i32, %c8_i32_58 : i32
    %140 = tpu.assume_multiple %139, 8 : i32
    %141 = arith.index_cast %140 : i32 to index
    %c0_59 = arith.constant 0 : index
    %142 = vector.load %arg2[%141, %c0_59] : memref<40x8xf32, #tpu.memory_space<vmem>>, vector<8x8xf32>
    %c0_60 = arith.constant 0 : index
    %c0_61 = arith.constant 0 : index
    %143 = vector.load %arg8[%c0_60, %c0_61] : memref<8x256xf32, #tpu.memory_space<vmem>>, vector<8x256xf32>
    %cst_62 = arith.constant dense<0.000000e+00> : vector<8x256xf32>
    %144 = tpu.matmul %142, %143, %cst_62 {dimension_numbers = #tpu.dot_dimension_numbers<[1], [0], [0], [1], [0, 0, 1, 1], [], []>} : vector<8x8xf32>, vector<8x256xf32>, vector<8x256xf32> -> vector<8x256xf32>
    %145 = vector.extract_strided_slice %144 {offsets = [0, 0], sizes = [8, 128], strides = [1, 1]} : vector<8x256xf32> to vector<8x128xf32>
    %146 = vector.extract_strided_slice %144 {offsets = [0, 128], sizes = [8, 128], strides = [1, 1]} : vector<8x256xf32> to vector<8x128xf32>
    %147 = arith.index_cast %140 : i32 to index
    %c0_63 = arith.constant 0 : index
    %148 = vector.load %arg7[%147, %c0_63] : memref<40x512xf32, #tpu.memory_space<vmem>>, vector<8x512xf32>
    %149 = arith.truncf %145 : vector<8x128xf32> to vector<8x128xbf16>
    %c0_64 = arith.constant 0 : index
    %c0_65 = arith.constant 0 : index
    %150 = vector.load %arg4[%c0_64, %c0_65] : memref<128x512xbf16, #tpu.memory_space<vmem>>, vector<128x512xbf16>
    %cst_66 = arith.constant dense<0.000000e+00> : vector<8x512xf32>
    %151 = tpu.matmul %149, %150, %cst_66 {dimension_numbers = #tpu.dot_dimension_numbers<[1], [0], [0], [1], [0, 0, 1, 1], [], []>} : vector<8x128xbf16>, vector<128x512xbf16>, vector<8x512xf32> -> vector<8x512xf32>
    %152 = arith.addf %148, %151 : vector<8x512xf32>
    %153 = vector.extract_strided_slice %152 {offsets = [0, 0], sizes = [8, 128], strides = [1, 1]} : vector<8x512xf32> to vector<8x128xf32>
    %154 = arith.negf %153 : vector<8x128xf32>
    %155 = math.exp %154 : vector<8x128xf32>
    %cst_67 = arith.constant 1.000000e+00 : f32
    %156 = vector.broadcast %cst_67 : f32 to vector<8x128xf32>
    %157 = arith.addf %156, %155 : vector<8x128xf32>
    %158 = arith.divf %156, %157 : vector<8x128xf32>
    %159 = vector.extract_strided_slice %152 {offsets = [0, 128], sizes = [8, 128], strides = [1, 1]} : vector<8x512xf32> to vector<8x128xf32>
    %160 = arith.negf %159 : vector<8x128xf32>
    %161 = math.exp %160 : vector<8x128xf32>
    %cst_68 = arith.constant 1.000000e+00 : f32
    %162 = vector.broadcast %cst_68 : f32 to vector<8x128xf32>
    %163 = arith.addf %162, %161 : vector<8x128xf32>
    %164 = arith.divf %162, %163 : vector<8x128xf32>
    %165 = vector.extract_strided_slice %152 {offsets = [0, 256], sizes = [8, 128], strides = [1, 1]} : vector<8x512xf32> to vector<8x128xf32>
    %166 = math.tanh %165 : vector<8x128xf32>
    %167 = vector.extract_strided_slice %152 {offsets = [0, 384], sizes = [8, 128], strides = [1, 1]} : vector<8x512xf32> to vector<8x128xf32>
    %168 = arith.negf %167 : vector<8x128xf32>
    %169 = math.exp %168 : vector<8x128xf32>
    %cst_69 = arith.constant 1.000000e+00 : f32
    %170 = vector.broadcast %cst_69 : f32 to vector<8x128xf32>
    %171 = arith.addf %170, %169 : vector<8x128xf32>
    %172 = arith.divf %170, %171 : vector<8x128xf32>
    %173 = arith.mulf %158, %166 : vector<8x128xf32>
    %174 = arith.mulf %172, %146 : vector<8x128xf32>
    %175 = arith.addf %173, %174 : vector<8x128xf32>
    %176 = math.tanh %175 : vector<8x128xf32>
    %177 = arith.mulf %164, %176 : vector<8x128xf32>
    %c0_70 = arith.constant 0 : index
    %c0_71 = arith.constant 0 : index
    %178 = vector.load %arg8[%c0_70, %c0_71] : memref<8x256xf32, #tpu.memory_space<vmem>>, vector<8x128xf32>
    tpu.vector_store %arg8[%c0_70, %c0_71], %177 {strides = array<i32>} : memref<8x256xf32, #tpu.memory_space<vmem>>, vector<8x128xf32>,
    %c0_72 = arith.constant 0 : index
    %c128_73 = arith.constant 128 : index
    %179 = vector.load %arg8[%c0_72, %c128_73] : memref<8x256xf32, #tpu.memory_space<vmem>>, vector<8x128xf32>
    tpu.vector_store %arg8[%c0_72, %c128_73], %175 {strides = array<i32>} : memref<8x256xf32, #tpu.memory_space<vmem>>, vector<8x128xf32>,
    %180 = arith.index_cast %140 : i32 to index
    %c0_74 = arith.constant 0 : index
    %181 = vector.load %arg6[%180, %c0_74] : memref<40x128xf32, #tpu.memory_space<vmem>>, vector<8x128xf32>
    tpu.vector_store %arg6[%180, %c0_74], %177 {strides = array<i32>} : memref<40x128xf32, #tpu.memory_space<vmem>>, vector<8x128xf32>,
    %c4_i32 = arith.constant 4 : i32
    %c8_i32_75 = arith.constant 8 : i32
    %182 = arith.muli %c4_i32, %c8_i32_75 : i32
    %183 = tpu.assume_multiple %182, 8 : i32
    %184 = arith.index_cast %183 : i32 to index
    %c0_76 = arith.constant 0 : index
    %185 = vector.load %arg2[%184, %c0_76] : memref<40x8xf32, #tpu.memory_space<vmem>>, vector<8x8xf32>
    %c0_77 = arith.constant 0 : index
    %c0_78 = arith.constant 0 : index
    %186 = vector.load %arg8[%c0_77, %c0_78] : memref<8x256xf32, #tpu.memory_space<vmem>>, vector<8x256xf32>
    %cst_79 = arith.constant dense<0.000000e+00> : vector<8x256xf32>
    %187 = tpu.matmul %185, %186, %cst_79 {dimension_numbers = #tpu.dot_dimension_numbers<[1], [0], [0], [1], [0, 0, 1, 1], [], []>} : vector<8x8xf32>, vector<8x256xf32>, vector<8x256xf32> -> vector<8x256xf32>
    %188 = vector.extract_strided_slice %187 {offsets = [0, 0], sizes = [8, 128], strides = [1, 1]} : vector<8x256xf32> to vector<8x128xf32>
    %189 = vector.extract_strided_slice %187 {offsets = [0, 128], sizes = [8, 128], strides = [1, 1]} : vector<8x256xf32> to vector<8x128xf32>
    %190 = arith.index_cast %183 : i32 to index
    %c0_80 = arith.constant 0 : index
    %191 = vector.load %arg7[%190, %c0_80] : memref<40x512xf32, #tpu.memory_space<vmem>>, vector<8x512xf32>
    %192 = arith.truncf %188 : vector<8x128xf32> to vector<8x128xbf16>
    %c0_81 = arith.constant 0 : index
    %c0_82 = arith.constant 0 : index
    %193 = vector.load %arg4[%c0_81, %c0_82] : memref<128x512xbf16, #tpu.memory_space<vmem>>, vector<128x512xbf16>
    %cst_83 = arith.constant dense<0.000000e+00> : vector<8x512xf32>
    %194 = tpu.matmul %192, %193, %cst_83 {dimension_numbers = #tpu.dot_dimension_numbers<[1], [0], [0], [1], [0, 0, 1, 1], [], []>} : vector<8x128xbf16>, vector<128x512xbf16>, vector<8x512xf32> -> vector<8x512xf32>
    %195 = arith.addf %191, %194 : vector<8x512xf32>
    %196 = vector.extract_strided_slice %195 {offsets = [0, 0], sizes = [8, 128], strides = [1, 1]} : vector<8x512xf32> to vector<8x128xf32>
    %197 = arith.negf %196 : vector<8x128xf32>
    %198 = math.exp %197 : vector<8x128xf32>
    %cst_84 = arith.constant 1.000000e+00 : f32
    %199 = vector.broadcast %cst_84 : f32 to vector<8x128xf32>
    %200 = arith.addf %199, %198 : vector<8x128xf32>
    %201 = arith.divf %199, %200 : vector<8x128xf32>
    %202 = vector.extract_strided_slice %195 {offsets = [0, 128], sizes = [8, 128], strides = [1, 1]} : vector<8x512xf32> to vector<8x128xf32>
    %203 = arith.negf %202 : vector<8x128xf32>
    %204 = math.exp %203 : vector<8x128xf32>
    %cst_85 = arith.constant 1.000000e+00 : f32
    %205 = vector.broadcast %cst_85 : f32 to vector<8x128xf32>
    %206 = arith.addf %205, %204 : vector<8x128xf32>
    %207 = arith.divf %205, %206 : vector<8x128xf32>
    %208 = vector.extract_strided_slice %195 {offsets = [0, 256], sizes = [8, 128], strides = [1, 1]} : vector<8x512xf32> to vector<8x128xf32>
    %209 = math.tanh %208 : vector<8x128xf32>
    %210 = vector.extract_strided_slice %195 {offsets = [0, 384], sizes = [8, 128], strides = [1, 1]} : vector<8x512xf32> to vector<8x128xf32>
    %211 = arith.negf %210 : vector<8x128xf32>
    %212 = math.exp %211 : vector<8x128xf32>
    %cst_86 = arith.constant 1.000000e+00 : f32
    %213 = vector.broadcast %cst_86 : f32 to vector<8x128xf32>
    %214 = arith.addf %213, %212 : vector<8x128xf32>
    %215 = arith.divf %213, %214 : vector<8x128xf32>
    %216 = arith.mulf %201, %209 : vector<8x128xf32>
    %217 = arith.mulf %215, %189 : vector<8x128xf32>
    %218 = arith.addf %216, %217 : vector<8x128xf32>
    %219 = math.tanh %218 : vector<8x128xf32>
    %220 = arith.mulf %207, %219 : vector<8x128xf32>
    %c0_87 = arith.constant 0 : index
    %c0_88 = arith.constant 0 : index
    %221 = vector.load %arg8[%c0_87, %c0_88] : memref<8x256xf32, #tpu.memory_space<vmem>>, vector<8x128xf32>
    tpu.vector_store %arg8[%c0_87, %c0_88], %220 {strides = array<i32>} : memref<8x256xf32, #tpu.memory_space<vmem>>, vector<8x128xf32>,
    %c0_89 = arith.constant 0 : index
    %c128_90 = arith.constant 128 : index
    %222 = vector.load %arg8[%c0_89, %c128_90] : memref<8x256xf32, #tpu.memory_space<vmem>>, vector<8x128xf32>
    tpu.vector_store %arg8[%c0_89, %c128_90], %218 {strides = array<i32>} : memref<8x256xf32, #tpu.memory_space<vmem>>, vector<8x128xf32>,
    %223 = arith.index_cast %183 : i32 to index
    %c0_91 = arith.constant 0 : index
    %224 = vector.load %arg6[%223, %c0_91] : memref<40x128xf32, #tpu.memory_space<vmem>>, vector<8x128xf32>
    tpu.vector_store %arg6[%223, %c0_91], %220 {strides = array<i32>} : memref<40x128xf32, #tpu.memory_space<vmem>>, vector<8x128xf32>,
    %c5_i32 = arith.constant 5 : i32
    return
  }
  func.func @transform_0(%arg0: i32) -> (i32, i32) {
    %c0_i32 = arith.constant 0 : i32
    %c0_i32_0 = arith.constant 0 : i32
    return %arg0, %c0_i32 : i32, i32
  }
  func.func @transform_1(%arg0: i32) -> (i32, i32) {
    %c0_i32 = arith.constant 0 : i32
    %c0_i32_0 = arith.constant 0 : i32
    return %arg0, %c0_i32 : i32, i32
  }
  func.func @transform_2(%arg0: i32) -> (i32, i32) {
    %c0_i32 = arith.constant 0 : i32
    %c0_i32_0 = arith.constant 0 : i32
    %c0_i32_1 = arith.constant 0 : i32
    return %c0_i32, %c0_i32_0 : i32, i32
  }
  func.func @transform_3(%arg0: i32) -> (i32, i32) {
    %c0_i32 = arith.constant 0 : i32
    %c0_i32_0 = arith.constant 0 : i32
    %c0_i32_1 = arith.constant 0 : i32
    return %c0_i32, %c0_i32_0 : i32, i32
  }
  func.func @transform_4(%arg0: i32) -> (i32, i32) {
    %c0_i32 = arith.constant 0 : i32
    %c0_i32_0 = arith.constant 0 : i32
    %c0_i32_1 = arith.constant 0 : i32
    return %c0_i32, %c0_i32_0 : i32, i32
  }
  func.func @transform_5(%arg0: i32) -> (i32, i32) {
    %c0_i32 = arith.constant 0 : i32
    %c0_i32_0 = arith.constant 0 : i32
    return %arg0, %c0_i32 : i32, i32
  }
}

</mosaic_0001>

<llo_original>
// kernel: tpu_custom_call.1
$region0: #{tpu_custom_call.1}
  #allocation0 [shape = 'u32[]', space=smem, size = 0x4, offset = 0x4, fixed_abs, tag = 'smem constant byte address 0x4 - core index']
  #allocation1 [shape = 'u32[144,128]{1,0:T(1,128)}', space=vmem, size = 0x12000, scoped, tag = 'internal scratch']
  #allocation2 [shape = 'f32[40,512]{1,0:T(8,128)}', space=vmem, size = 0x14000, scoped, tag = 'scratch operand']
  #allocation3 [shape = 'f32[8,256]{1,0:T(8,128)}', space=vmem, size = 0x2000, scoped, tag = 'scratch operand']
  %s0 = inlined_call_operand.vmem [shape: bf16[40,128], index: 0, kind: input, shape index: {}]
  %s1 = inlined_call_operand.vmem [shape: f32[40,8], index: 1, kind: input, shape index: {}]
  %s2 = inlined_call_operand.hbm [shape: bf16[128,512], index: 2, kind: input, shape index: {}]
  %s3 = inlined_call_operand.hbm [shape: bf16[128,512], index: 3, kind: input, shape index: {}]
  %s4 = inlined_call_operand.vmem [shape: f32[1,512], index: 4, kind: input, shape index: {}]
  %s5 = inlined_call_operand.hbm [shape: f32[40,128], index: 5, kind: output, shape index: {}]
  %s6 = sld [smem:[#allocation0]]
  $region42: #{tpu_custom_call.1} parent=0
    _
  %s8 = ssub.s32 1, %s6
  %s9 = scalar_select 0, %s8, %s6
  $region1: #{tpu_custom_call.1} parent=0
    #allocation4 [shape = 'u8[131072]{0}', space=vmem, size = 0x20000, scoped, tag = 'input window, operand 2, single buffered']
    #allocation5 [shape = 's32[1]{0}', space=sflag, size = 0x4, scoped, tag = 'scoped memory for tpu_custom_call.1']
    #allocation6 [shape = 's32[1]{0}', space=sflag, size = 0x4, scoped, tag = 'scoped memory for tpu_custom_call.1']
    #allocation7 [shape = 'u8[131072]{0}', space=vmem, size = 0x20000, scoped, tag = 'input window, operand 3, single buffered']
    #allocation8 [shape = 's32[1]{0}', space=sflag, size = 0x4, scoped, tag = 'scoped memory for tpu_custom_call.1']
    #allocation9 [shape = 'u8[20480]{0}', space=vmem, size = 0x5000, scoped, tag = 'output window, operand 0, single buffered']
    %10 = vsyncpa [#allocation5], 0
    %11 = vsyncpa [#allocation8], 0
    %12 = vsyncpa [#allocation6], 0
    // Predicated region
    $region2: #{tpu_custom_call.1} parent=1 // pred_check
      _
    $region3: #{tpu_custom_call.1} parent=1 // pred_check_branch
      %14 = sbr.rel (0) target = $region5
    $region4: #{tpu_custom_call.1} parent=1 // pred_region
      _
    $region5: #{tpu_custom_call.1} parent=1 // pred_fallthru
      _
    // Predicated region
    $region6: #{tpu_custom_call.1} parent=1 // pred_check
      _
    $region7: #{tpu_custom_call.1} parent=1 // pred_check_branch
      %16 = sbr.rel (0) target = $region9
    $region8: #{tpu_custom_call.1} parent=1 // pred_region
      _
    $region9: #{tpu_custom_call.1} parent=1 // pred_fallthru
      _
    // Predicated region
    $region10: #{tpu_custom_call.1} parent=1 // pred_check
      _
    $region11: #{tpu_custom_call.1} parent=1 // pred_check_branch
      %18 = sbr.rel (0) target = $region13
    $region12: #{tpu_custom_call.1} parent=1 // pred_region
      %s20 = ssub.s32 4096, 4096
      %21 = vsyncadd [#allocation5], %s20
      %s22 = sshll.u32 [#allocation4], 4
      %s23 = int_to_ptr.vmem [resolvable:$true] %s22
      %28 = dma.hbm_to_vmem [thread:$0]  %s2, 4096, %s23, [#allocation5], 256, 256, 16
    $region13: #{tpu_custom_call.1} parent=1 // pred_fallthru
      _
    // Predicated region
    $region14: #{tpu_custom_call.1} parent=1 // pred_check
      _
    $region15: #{tpu_custom_call.1} parent=1 // pred_check_branch
      %30 = sbr.rel (0) target = $region17
    $region16: #{tpu_custom_call.1} parent=1 // pred_region
      %s32 = ssub.s32 4096, 4096
      %33 = vsyncadd [#allocation8], %s32
      %s34 = sshll.u32 [#allocation7], 4
      %s35 = int_to_ptr.vmem [resolvable:$true] %s34
      %40 = dma.hbm_to_vmem [thread:$0]  %s3, 4096, %s35, [#allocation8], 256, 256, 16
    $region17: #{tpu_custom_call.1} parent=1 // pred_fallthru
      _
    // Predicated region
    $region18: #{tpu_custom_call.1} parent=1 // pred_check
      _
    $region19: #{tpu_custom_call.1} parent=1 // pred_check_branch
      %42 = sbr.rel (0) target = $region21
    $region20: #{tpu_custom_call.1} parent=1 // pred_region
      _
    $region21: #{tpu_custom_call.1} parent=1 // pred_fallthru
      _
    // Predicated region
    $region22: #{tpu_custom_call.1} parent=1 // pred_check
      _
    $region23: #{tpu_custom_call.1} parent=1 // pred_check_branch
      %44 = sbr.rel (0) target = $region25
    $region24: #{tpu_custom_call.1} parent=1 // pred_region
      %45 = dma.done [#allocation5], 4096
    $region25: #{tpu_custom_call.1} parent=1 // pred_fallthru
      _
    // Predicated region
    $region26: #{tpu_custom_call.1} parent=1 // pred_check
      _
    $region27: #{tpu_custom_call.1} parent=1 // pred_check_branch
      %47 = sbr.rel (0) target = $region29
    $region28: #{tpu_custom_call.1} parent=1 // pred_region
      %48 = dma.done [#allocation8], 4096
    $region29: #{tpu_custom_call.1} parent=1 // pred_fallthru
      _
    %p50 = scmp.eq.s32.totalorder 0, 0
    // Predicated region
    $region30: #{tpu_custom_call.1} parent=1 // pred_check
      %p51 = pneg %p50
    $region31: #{tpu_custom_call.1} parent=1 // pred_check_branch
      %53 = sbr.rel (%p51) target = $region33
    $region32: #{tpu_custom_call.1} parent=1 // pred_region
      %54 = vst [vmem:[#allocation3] sm:$0xff] 0.0
      %55 = vst [vmem:[#allocation3 + $0x8] sm:$0xff] 0.0
    $region33: #{tpu_custom_call.1} parent=1 // pred_fallthru
      _
    %v56 = vld [vmem:[%s0] sm:$0xf]
    %v57 = vld [vmem:[%s0 + $0x4] sm:$0xf]
    %v58 = vld [vmem:[%s0 + $0x8] sm:$0xf]
    %v59 = vld [vmem:[%s0 + $0xc] sm:$0xf]
    %v60 = vld [vmem:[%s0 + $0x10] sm:$0xf]
    %v61 = vld [vmem:[#allocation4] sm:$0xff]
    %v62 = vld [vmem:[#allocation4 + $0x8] sm:$0xff]
    %v63 = vld [vmem:[#allocation4 + $0x10] sm:$0xff]
    %v64 = vld [vmem:[#allocation4 + $0x18] sm:$0xff]
    %v65 = vld [vmem:[#allocation4 + $0x20] sm:$0xff]
    %v66 = vld [vmem:[#allocation4 + $0x28] sm:$0xff]
    %v67 = vld [vmem:[#allocation4 + $0x30] sm:$0xff]
    %v68 = vld [vmem:[#allocation4 + $0x38] sm:$0xff]
    %v69 = vld [vmem:[#allocation4 + $0x40] sm:$0xff]
    %v70 = vld [vmem:[#allocation4 + $0x48] sm:$0xff]
    %v71 = vld [vmem:[#allocation4 + $0x50] sm:$0xff]
    %v72 = vld [vmem:[#allocation4 + $0x58] sm:$0xff]
    %v73 = vld [vmem:[#allocation4 + $0x60] sm:$0xff]
    %v74 = vld [vmem:[#allocation4 + $0x68] sm:$0xff]
    %v75 = vld [vmem:[#allocation4 + $0x70] sm:$0xff]
    %v76 = vld [vmem:[#allocation4 + $0x78] sm:$0xff]
    %v77 = vld [vmem:[#allocation4 + $0x80] sm:$0xff]
    %v78 = vld [vmem:[#allocation4 + $0x88] sm:$0xff]
    %v79 = vld [vmem:[#allocation4 + $0x90] sm:$0xff]
    %v80 = vld [vmem:[#allocation4 + $0x98] sm:$0xff]
    %v81 = vld [vmem:[#allocation4 + $0xa0] sm:$0xff]
    %v82 = vld [vmem:[#allocation4 + $0xa8] sm:$0xff]
    %v83 = vld [vmem:[#allocation4 + $0xb0] sm:$0xff]
    %v84 = vld [vmem:[#allocation4 + $0xb8] sm:$0xff]
    %v85 = vld [vmem:[#allocation4 + $0xc0] sm:$0xff]
    %v86 = vld [vmem:[#allocation4 + $0xc8] sm:$0xff]
    %v87 = vld [vmem:[#allocation4 + $0xd0] sm:$0xff]
    %v88 = vld [vmem:[#allocation4 + $0xd8] sm:$0xff]
    %v89 = vld [vmem:[#allocation4 + $0xe0] sm:$0xff]
    %v90 = vld [vmem:[#allocation4 + $0xe8] sm:$0xff]
    %v91 = vld [vmem:[#allocation4 + $0xf0] sm:$0xff]
    %v92 = vld [vmem:[#allocation4 + $0xf8] sm:$0xff]
    %v93 = vld [vmem:[%s4] sm:$0xf]
    %v95 = vlaneseq
    %v96 = vshrl.u32 %v95, 7
    %v97 = vsub.s32 0, %v96
    %v98 = vrot.slane %v93, %v97
    %v99 = vlaneseq
    %v100 = vshrl.u32 %v99, 7
    %v101 = vsub.s32 1, %v100
    %v102 = vrot.slane %v93, %v101
    %v103 = vlaneseq
    %v104 = vshrl.u32 %v103, 7
    %v105 = vsub.s32 2, %v104
    %v106 = vrot.slane %v93, %v105
    %v107 = vlaneseq
    %v108 = vshrl.u32 %v107, 7
    %v109 = vsub.s32 3, %v108
    %v110 = vrot.slane %v93, %v109
    %v120 = vunpack.c.l.b16 %v56
    %v121 = vunpack.c.l.b16 %v57
    %v122 = vunpack.c.l.b16 %v58
    %v123 = vunpack.c.l.b16 %v59
    %v124 = vunpack.c.l.b16 %v60
    %v125 = vpack.c.b16 %v121, %v120
    %v126 = vpack.c.b16 %v123, %v122
    %v127 = vpack.c.b16 %v124, %v124
    %v163 = vunpack.c.l.b16 %v61
    %v164 = vunpack.c.h.b16 %v61
    %v165 = vunpack.c.l.b16 %v62
    %v166 = vunpack.c.h.b16 %v62
    %v167 = vunpack.c.l.b16 %v63
    %v168 = vunpack.c.h.b16 %v63
    %v169 = vunpack.c.l.b16 %v64
    %v170 = vunpack.c.h.b16 %v64
    %v171 = vunpack.c.l.b16 %v65
    %v172 = vunpack.c.h.b16 %v65
    %v173 = vunpack.c.l.b16 %v66
    %v174 = vunpack.c.h.b16 %v66
    %v175 = vunpack.c.l.b16 %v67
    %v176 = vunpack.c.h.b16 %v67
    %v177 = vunpack.c.l.b16 %v68
    %v178 = vunpack.c.h.b16 %v68
    %v179 = vunpack.c.l.b16 %v69
    %v180 = vunpack.c.h.b16 %v69
    %v181 = vunpack.c.l.b16 %v70
    %v182 = vunpack.c.h.b16 %v70
    %v183 = vunpack.c.l.b16 %v71
    %v184 = vunpack.c.h.b16 %v71
    %v185 = vunpack.c.l.b16 %v72
    %v186 = vunpack.c.h.b16 %v72
    %v187 = vunpack.c.l.b16 %v73
    %v188 = vunpack.c.h.b16 %v73
    %v189 = vunpack.c.l.b16 %v74
    %v190 = vunpack.c.h.b16 %v74
    %v191 = vunpack.c.l.b16 %v75
    %v192 = vunpack.c.h.b16 %v75
    %v193 = vunpack.c.l.b16 %v76
    %v194 = vunpack.c.h.b16 %v76
    %v195 = vunpack.c.l.b16 %v77
    %v196 = vunpack.c.h.b16 %v77
    %v197 = vunpack.c.l.b16 %v78
    %v198 = vunpack.c.h.b16 %v78
    %v199 = vunpack.c.l.b16 %v79
    %v200 = vunpack.c.h.b16 %v79
    %v201 = vunpack.c.l.b16 %v80
    %v202 = vunpack.c.h.b16 %v80
    %v203 = vunpack.c.l.b16 %v81
    %v204 = vunpack.c.h.b16 %v81
    %v205 = vunpack.c.l.b16 %v82
    %v206 = vunpack.c.h.b16 %v82
    %v207 = vunpack.c.l.b16 %v83
    %v208 = vunpack.c.h.b16 %v83
    %v209 = vunpack.c.l.b16 %v84
    %v210 = vunpack.c.h.b16 %v84
    %v211 = vunpack.c.l.b16 %v85
    %v212 = vunpack.c.h.b16 %v85
    %v213 = vunpack.c.l.b16 %v86
    %v214 = vunpack.c.h.b16 %v86
    %v215 = vunpack.c.l.b16 %v87
    %v216 = vunpack.c.h.b16 %v87
    %v217 = vunpack.c.l.b16 %v88
    %v218 = vunpack.c.h.b16 %v88
    %v219 = vunpack.c.l.b16 %v89
    %v220 = vunpack.c.h.b16 %v89
    %v221 = vunpack.c.l.b16 %v90
    %v222 = vunpack.c.h.b16 %v90
    %v223 = vunpack.c.l.b16 %v91
    %v224 = vunpack.c.h.b16 %v91
    %v225 = vunpack.c.l.b16 %v92
    %v226 = vunpack.c.h.b16 %v92
    %v227 = vpack.c.b16 %v167, %v163
    %v228 = vpack.c.b16 %v168, %v164
    %v229 = vpack.c.b16 %v169, %v165
    %v230 = vpack.c.b16 %v170, %v166
    %v231 = vpack.c.b16 %v175, %v171
    %v232 = vpack.c.b16 %v176, %v172
    %v233 = vpack.c.b16 %v177, %v173
    %v234 = vpack.c.b16 %v178, %v174
    %v235 = vpack.c.b16 %v183, %v179
    %v236 = vpack.c.b16 %v184, %v180
    %v237 = vpack.c.b16 %v185, %v181
    %v238 = vpack.c.b16 %v186, %v182
    %v239 = vpack.c.b16 %v191, %v187
    %v240 = vpack.c.b16 %v192, %v188
    %v241 = vpack.c.b16 %v193, %v189
    %v242 = vpack.c.b16 %v194, %v190
    %v243 = vpack.c.b16 %v199, %v195
    %v244 = vpack.c.b16 %v200, %v196
    %v245 = vpack.c.b16 %v201, %v197
    %v246 = vpack.c.b16 %v202, %v198
    %v247 = vpack.c.b16 %v207, %v203
    %v248 = vpack.c.b16 %v208, %v204
    %v249 = vpack.c.b16 %v209, %v205
    %v250 = vpack.c.b16 %v210, %v206
    %v251 = vpack.c.b16 %v215, %v211
    %v252 = vpack.c.b16 %v216, %v212
    %v253 = vpack.c.b16 %v217, %v213
    %v254 = vpack.c.b16 %v218, %v214
    %v255 = vpack.c.b16 %v223, %v219
    %v256 = vpack.c.b16 %v224, %v220
    %v257 = vpack.c.b16 %v225, %v221
    %v258 = vpack.c.b16 %v226, %v222
    %291 = vmatprep.subr.bf16.mxu0 %v228
    %292 = vmatpush1.bf16.msra.mxu0 %v227
    %293 = vmatprep.subr.bf16.mxu0 %v232
    %294 = vmatpush1.bf16.msra.mxu0 %v231
    %295 = vmatprep.subr.bf16.mxu0 %v236
    %296 = vmatpush1.bf16.msra.mxu0 %v235
    %297 = vmatprep.subr.bf16.mxu0 %v240
    %298 = vmatpush1.bf16.msra.mxu0 %v239
    %299 = vmatprep.subr.bf16.mxu0 %v244
    %300 = vmatpush1.bf16.msra.mxu0 %v243
    %301 = vmatprep.subr.bf16.mxu0 %v248
    %302 = vmatpush1.bf16.msra.mxu0 %v247
    %303 = vmatprep.subr.bf16.mxu0 %v252
    %304 = vmatpush1.bf16.msra.mxu0 %v251
    %305 = vmatprep.subr.bf16.mxu0 %v256
    %306 = vmatpush1.bf16.msra.mxu0 %v255
    %307 = vmatprep.subr.bf16.mxu0 0
    %308 = vmatpush1.bf16.msra.mxu0 0
    %309 = vmatprep.subr.bf16.mxu0 0
    %310 = vmatpush1.bf16.msra.mxu0 0
    %311 = vmatprep.subr.bf16.mxu0 0
    %312 = vmatpush1.bf16.msra.mxu0 0
    %313 = vmatprep.subr.bf16.mxu0 0
    %314 = vmatpush1.bf16.msra.mxu0 0
    %315 = vmatprep.subr.bf16.mxu0 0
    %316 = vmatpush1.bf16.msra.mxu0 0
    %317 = vmatprep.subr.bf16.mxu0 0
    %318 = vmatpush1.bf16.msra.mxu0 0
    %319 = vmatprep.subr.bf16.mxu0 0
    %320 = vmatpush1.bf16.msra.mxu0 0
    %321 = vmatprep.subr.bf16.mxu0 0
    %322 = vmatpush1.bf16.msra.mxu0 0
    %323 = vmatprep.mubr.bf16.mxu0 0
    %324 = vmatmul.mubr.bf16.gmra.mrb[0].mxu0 %v125
    %v325 = vpop.f32.mrb[0].mxu0
    %v326 = vadd.f32 %v98, %v325
    %v327 = vpop.f32.mrb[0].mxu0
    %v328 = vadd.f32 %v102, %v327
    %v329 = vpop.f32.mrb[0].mxu0
    %v330 = vadd.f32 %v98, %v329
    %v331 = vpop.f32.mrb[0].mxu0
    %v332 = vadd.f32 %v102, %v331
    %333 = vmatprep.mubr.bf16.mxu0 0
    %334 = vmatmul.mubr.bf16.gmra.mrb[0].mxu0 %v126
    %v335 = vpop.f32.mrb[0].mxu0
    %v336 = vadd.f32 %v98, %v335
    %v337 = vpop.f32.mrb[0].mxu0
    %v338 = vadd.f32 %v102, %v337
    %v339 = vpop.f32.mrb[0].mxu0
    %v340 = vadd.f32 %v98, %v339
    %v341 = vpop.f32.mrb[0].mxu0
    %v342 = vadd.f32 %v102, %v341
    %343 = vmatprep.mubr.bf16.mxu0 0
    %344 = vmatmul.mubr.bf16.gmra.mrb[0].mxu0 %v127
    %v345 = vpop.f32.mrb[0].mxu0
    %v346 = vadd.f32 %v98, %v345
    %v347 = vpop.f32.mrb[0].mxu0
    %v348 = vadd.f32 %v102, %v347
    %v349 = vpop.f32.mrb[0].mxu0
    %v350 = vpop.f32.mrb[0].mxu0
    %351 = vdwg.mxu0
    %352 = vmatprep.subr.bf16.mxu0 %v230
    %353 = vmatpush1.bf16.msra.mxu0 %v229
    %354 = vmatprep.subr.bf16.mxu0 %v234
    %355 = vmatpush1.bf16.msra.mxu0 %v233
    %356 = vmatprep.subr.bf16.mxu0 %v238
    %357 = vmatpush1.bf16.msra.mxu0 %v237
    %358 = vmatprep.subr.bf16.mxu0 %v242
    %359 = vmatpush1.bf16.msra.mxu0 %v241
    %360 = vmatprep.subr.bf16.mxu0 %v246
    %361 = vmatpush1.bf16.msra.mxu0 %v245
    %362 = vmatprep.subr.bf16.mxu0 %v250
    %363 = vmatpush1.bf16.msra.mxu0 %v249
    %364 = vmatprep.subr.bf16.mxu0 %v254
    %365 = vmatpush1.bf16.msra.mxu0 %v253
    %366 = vmatprep.subr.bf16.mxu0 %v258
    %367 = vmatpush1.bf16.msra.mxu0 %v257
    %368 = vmatprep.subr.bf16.mxu0 0
    %369 = vmatpush1.bf16.msra.mxu0 0
    %370 = vmatprep.subr.bf16.mxu0 0
    %371 = vmatpush1.bf16.msra.mxu0 0
    %372 = vmatprep.subr.bf16.mxu0 0
    %373 = vmatpush1.bf16.msra.mxu0 0
    %374 = vmatprep.subr.bf16.mxu0 0
    %375 = vmatpush1.bf16.msra.mxu0 0
    %376 = vmatprep.subr.bf16.mxu0 0
    %377 = vmatpush1.bf16.msra.mxu0 0
    %378 = vmatprep.subr.bf16.mxu0 0
    %379 = vmatpush1.bf16.msra.mxu0 0
    %380 = vmatprep.subr.bf16.mxu0 0
    %381 = vmatpush1.bf16.msra.mxu0 0
    %382 = vmatprep.subr.bf16.mxu0 0
    %383 = vmatpush1.bf16.msra.mxu0 0
    %384 = vmatprep.mubr.bf16.mxu0 0
    %385 = vmatmul.mubr.bf16.gmra.mrb[0].mxu0 %v125
    %v386 = vpop.f32.mrb[0].mxu0
    %v387 = vadd.f32 %v106, %v386
    %v388 = vpop.f32.mrb[0].mxu0
    %v389 = vadd.f32 %v110, %v388
    %v390 = vpop.f32.mrb[0].mxu0
    %v391 = vadd.f32 %v106, %v390
    %v392 = vpop.f32.mrb[0].mxu0
    %v393 = vadd.f32 %v110, %v392
    %394 = vmatprep.mubr.bf16.mxu0 0
    %395 = vmatmul.mubr.bf16.gmra.mrb[0].mxu0 %v126
    %v396 = vpop.f32.mrb[0].mxu0
    %v397 = vadd.f32 %v106, %v396
    %v398 = vpop.f32.mrb[0].mxu0
    %v399 = vadd.f32 %v110, %v398
    %v400 = vpop.f32.mrb[0].mxu0
    %v401 = vadd.f32 %v106, %v400
    %v402 = vpop.f32.mrb[0].mxu0
    %v403 = vadd.f32 %v110, %v402
    %404 = vmatprep.mubr.bf16.mxu0 0
    %405 = vmatmul.mubr.bf16.gmra.mrb[0].mxu0 %v127
    %v406 = vpop.f32.mrb[0].mxu0
    %v407 = vadd.f32 %v106, %v406
    %v408 = vpop.f32.mrb[0].mxu0
    %v409 = vadd.f32 %v110, %v408
    %v410 = vpop.f32.mrb[0].mxu0
    %v411 = vpop.f32.mrb[0].mxu0
    %412 = vdwg.mxu0
    %413 = vst [vmem:[#allocation2] sm:$0xff] %v326
    %414 = vst [vmem:[#allocation2 + $0x8] sm:$0xff] %v328
    %415 = vst [vmem:[#allocation2 + $0x10] sm:$0xff] %v387
    %416 = vst [vmem:[#allocation2 + $0x18] sm:$0xff] %v389
    %417 = vst [vmem:[#allocation2 + $0x20] sm:$0xff] %v330
    %418 = vst [vmem:[#allocation2 + $0x28] sm:$0xff] %v332
    %419 = vst [vmem:[#allocation2 + $0x30] sm:$0xff] %v391
    %420 = vst [vmem:[#allocation2 + $0x38] sm:$0xff] %v393
    %421 = vst [vmem:[#allocation2 + $0x40] sm:$0xff] %v336
    %422 = vst [vmem:[#allocation2 + $0x48] sm:$0xff] %v338
    %423 = vst [vmem:[#allocation2 + $0x50] sm:$0xff] %v397
    %424 = vst [vmem:[#allocation2 + $0x58] sm:$0xff] %v399
    %425 = vst [vmem:[#allocation2 + $0x60] sm:$0xff] %v340
    %426 = vst [vmem:[#allocation2 + $0x68] sm:$0xff] %v342
    %427 = vst [vmem:[#allocation2 + $0x70] sm:$0xff] %v401
    %428 = vst [vmem:[#allocation2 + $0x78] sm:$0xff] %v403
    %429 = vst [vmem:[#allocation2 + $0x80] sm:$0xff] %v346
    %430 = vst [vmem:[#allocation2 + $0x88] sm:$0xff] %v348
    %431 = vst [vmem:[#allocation2 + $0x90] sm:$0xff] %v407
    %432 = vst [vmem:[#allocation2 + $0x98] sm:$0xff] %v409
    %v433 = vld [vmem:[%s1] sm:$0xff]
    %v434 = vld [vmem:[#allocation3] sm:$0xff]
    %v435 = vld [vmem:[#allocation3 + $0x8] sm:$0xff]
    %vm436 = vcmask 64512
    %v438 = vsel %vm436, %v433, 0
    %440 = vmatprep.subr.mxu0 %v435
    %441 = vmatpush1.msra.mxu0 %v434
    %442 = vmatprep.subr.mxu0 0.0
    %443 = vmatpush1.msra.mxu0 0.0
    %444 = vmatprep.subr.mxu0 0.0
    %445 = vmatpush1.msra.mxu0 0.0
    %446 = vmatprep.subr.mxu0 0.0
    %447 = vmatpush1.msra.mxu0 0.0
    %448 = vmatprep.subr.mxu0 0.0
    %449 = vmatpush1.msra.mxu0 0.0
    %450 = vmatprep.subr.mxu0 0.0
    %451 = vmatpush1.msra.mxu0 0.0
    %452 = vmatprep.subr.mxu0 0.0
    %453 = vmatpush1.msra.mxu0 0.0
    %454 = vmatprep.subr.mxu0 0.0
    %455 = vmatpush1.msra.mxu0 0.0
    %456 = vmatprep.subr.mxu0 0.0
    %457 = vmatpush1.msra.mxu0 0.0
    %458 = vmatprep.subr.mxu0 0.0
    %459 = vmatpush1.msra.mxu0 0.0
    %460 = vmatprep.subr.mxu0 0.0
    %461 = vmatpush1.msra.mxu0 0.0
    %462 = vmatprep.subr.mxu0 0.0
    %463 = vmatpush1.msra.mxu0 0.0
    %464 = vmatprep.subr.mxu0 0.0
    %465 = vmatpush1.msra.mxu0 0.0
    %466 = vmatprep.subr.mxu0 0.0
    %467 = vmatpush1.msra.mxu0 0.0
    %468 = vmatprep.subr.mxu0 0.0
    %469 = vmatpush1.msra.mxu0 0.0
    %470 = vmatprep.subr.mxu0 0.0
    %471 = vmatpush1.msra.mxu0 0.0
    %472 = vmatprep.subr.mxu0 0.0
    %473 = vmatpush1.msra.mxu0 0.0
    %474 = vmatprep.subr.mxu0 0.0
    %475 = vmatpush1.msra.mxu0 0.0
    %476 = vmatprep.subr.mxu0 0.0
    %477 = vmatpush1.msra.mxu0 0.0
    %478 = vmatprep.subr.mxu0 0.0
    %479 = vmatpush1.msra.mxu0 0.0
    %480 = vmatprep.subr.mxu0 0.0
    %481 = vmatpush1.msra.mxu0 0.0
    %482 = vmatprep.subr.mxu0 0.0
    %483 = vmatpush1.msra.mxu0 0.0
    %484 = vmatprep.subr.mxu0 0.0
    %485 = vmatpush1.msra.mxu0 0.0
    %486 = vmatprep.subr.mxu0 0.0
    %487 = vmatpush1.msra.mxu0 0.0
    %488 = vmatprep.subr.mxu0 0.0
    %489 = vmatpush1.msra.mxu0 0.0
    %490 = vmatprep.subr.mxu0 0.0
    %491 = vmatpush1.msra.mxu0 0.0
    %492 = vmatprep.subr.mxu0 0.0
    %493 = vmatpush1.msra.mxu0 0.0
    %494 = vmatprep.subr.mxu0 0.0
    %495 = vmatpush1.msra.mxu0 0.0
    %496 = vmatprep.subr.mxu0 0.0
    %497 = vmatpush1.msra.mxu0 0.0
    %498 = vmatprep.subr.mxu0 0.0
    %499 = vmatpush1.msra.mxu0 0.0
    %500 = vmatprep.subr.mxu0 0.0
    %501 = vmatpush1.msra.mxu0 0.0
    %502 = vmatprep.subr.mxu0 0.0
    %503 = vmatpush1.msra.mxu0 0.0
    %504 = vmatprep.mubr.f32.mxu0 0.0
    %505 = vmatmul.mubr.f32.gmra.mrb[0].mxu0 %v438
    %v506 = vpop.f32.mrb[0].mxu0
    %v507 = vadd.f32 0.0, %v506
    %v508 = vpop.f32.mrb[0].mxu0
    %v509 = vadd.f32 0.0, %v508
    %510 = vdwg.mxu0
    %s511 = smul.u32 0, 4
    %s512 = smul.addr %s511, 8
    %s513 = scalar_lea.vmem [#allocation2], %s512
    %v514 = vld [vmem:[%s513] sm:$0xff]
    %v515 = vld [vmem:[%s513 + $0x8] sm:$0xff]
    %v516 = vld [vmem:[%s513 + $0x10] sm:$0xff]
    %v517 = vld [vmem:[%s513 + $0x18] sm:$0xff]
    %v518 = vpack.c.bf16 %v507, %v507
    %v519 = vld [vmem:[#allocation7] sm:$0xff]
    %v520 = vld [vmem:[#allocation7 + $0x8] sm:$0xff]
    %v521 = vld [vmem:[#allocation7 + $0x10] sm:$0xff]
    %v522 = vld [vmem:[#allocation7 + $0x18] sm:$0xff]
    %v523 = vld [vmem:[#allocation7 + $0x20] sm:$0xff]
    %v524 = vld [vmem:[#allocation7 + $0x28] sm:$0xff]
    %v525 = vld [vmem:[#allocation7 + $0x30] sm:$0xff]
    %v526 = vld [vmem:[#allocation7 + $0x38] sm:$0xff]
    %v527 = vld [vmem:[#allocation7 + $0x40] sm:$0xff]
    %v528 = vld [vmem:[#allocation7 + $0x48] sm:$0xff]
    %v529 = vld [vmem:[#allocation7 + $0x50] sm:$0xff]
    %v530 = vld [vmem:[#allocation7 + $0x58] sm:$0xff]
    %v531 = vld [vmem:[#allocation7 + $0x60] sm:$0xff]
    %v532 = vld [vmem:[#allocation7 + $0x68] sm:$0xff]
    %v533 = vld [vmem:[#allocation7 + $0x70] sm:$0xff]
    %v534 = vld [vmem:[#allocation7 + $0x78] sm:$0xff]
    %v535 = vld [vmem:[#allocation7 + $0x80] sm:$0xff]
    %v536 = vld [vmem:[#allocation7 + $0x88] sm:$0xff]
    %v537 = vld [vmem:[#allocation7 + $0x90] sm:$0xff]
    %v538 = vld [vmem:[#allocation7 + $0x98] sm:$0xff]
    %v539 = vld [vmem:[#allocation7 + $0xa0] sm:$0xff]
    %v540 = vld [vmem:[#allocation7 + $0xa8] sm:$0xff]
    %v541 = vld [vmem:[#allocation7 + $0xb0] sm:$0xff]
    %v542 = vld [vmem:[#allocation7 + $0xb8] sm:$0xff]
    %v543 = vld [vmem:[#allocation7 + $0xc0] sm:$0xff]
    %v544 = vld [vmem:[#allocation7 + $0xc8] sm:$0xff]
    %v545 = vld [vmem:[#allocation7 + $0xd0] sm:$0xff]
    %v546 = vld [vmem:[#allocation7 + $0xd8] sm:$0xff]
    %v547 = vld [vmem:[#allocation7 + $0xe0] sm:$0xff]
    %v548 = vld [vmem:[#allocation7 + $0xe8] sm:$0xff]
    %v549 = vld [vmem:[#allocation7 + $0xf0] sm:$0xff]
    %v550 = vld [vmem:[#allocation7 + $0xf8] sm:$0xff]
    %v583 = vunpack.c.l.b16 %v519
    %v584 = vunpack.c.h.b16 %v519
    %v585 = vunpack.c.l.b16 %v520
    %v586 = vunpack.c.h.b16 %v520
    %v587 = vunpack.c.l.b16 %v521
    %v588 = vunpack.c.h.b16 %v521
    %v589 = vunpack.c.l.b16 %v522
    %v590 = vunpack.c.h.b16 %v522
    %v591 = vunpack.c.l.b16 %v523
    %v592 = vunpack.c.h.b16 %v523
    %v593 = vunpack.c.l.b16 %v524
    %v594 = vunpack.c.h.b16 %v524
    %v595 = vunpack.c.l.b16 %v525
    %v596 = vunpack.c.h.b16 %v525
    %v597 = vunpack.c.l.b16 %v526
    %v598 = vunpack.c.h.b16 %v526
    %v599 = vunpack.c.l.b16 %v527
    %v600 = vunpack.c.h.b16 %v527
    %v601 = vunpack.c.l.b16 %v528
    %v602 = vunpack.c.h.b16 %v528
    %v603 = vunpack.c.l.b16 %v529
    %v604 = vunpack.c.h.b16 %v529
    %v605 = vunpack.c.l.b16 %v530
    %v606 = vunpack.c.h.b16 %v530
    %v607 = vunpack.c.l.b16 %v531
    %v608 = vunpack.c.h.b16 %v531
    %v609 = vunpack.c.l.b16 %v532
    %v610 = vunpack.c.h.b16 %v532
    %v611 = vunpack.c.l.b16 %v533
    %v612 = vunpack.c.h.b16 %v533
    %v613 = vunpack.c.l.b16 %v534
    %v614 = vunpack.c.h.b16 %v534
    %v615 = vunpack.c.l.b16 %v535
    %v616 = vunpack.c.h.b16 %v535
    %v617 = vunpack.c.l.b16 %v536
    %v618 = vunpack.c.h.b16 %v536
    %v619 = vunpack.c.l.b16 %v537
    %v620 = vunpack.c.h.b16 %v537
    %v621 = vunpack.c.l.b16 %v538
    %v622 = vunpack.c.h.b16 %v538
    %v623 = vunpack.c.l.b16 %v539
    %v624 = vunpack.c.h.b16 %v539
    %v625 = vunpack.c.l.b16 %v540
    %v626 = vunpack.c.h.b16 %v540
    %v627 = vunpack.c.l.b16 %v541
    %v628 = vunpack.c.h.b16 %v541
    %v629 = vunpack.c.l.b16 %v542
    %v630 = vunpack.c.h.b16 %v542
    %v631 = vunpack.c.l.b16 %v543
    %v632 = vunpack.c.h.b16 %v543
    %v633 = vunpack.c.l.b16 %v544
    %v634 = vunpack.c.h.b16 %v544
    %v635 = vunpack.c.l.b16 %v545
    %v636 = vunpack.c.h.b16 %v545
    %v637 = vunpack.c.l.b16 %v546
    %v638 = vunpack.c.h.b16 %v546
    %v639 = vunpack.c.l.b16 %v547
    %v640 = vunpack.c.h.b16 %v547
    %v641 = vunpack.c.l.b16 %v548
    %v642 = vunpack.c.h.b16 %v548
    %v643 = vunpack.c.l.b16 %v549
    %v644 = vunpack.c.h.b16 %v549
    %v645 = vunpack.c.l.b16 %v550
    %v646 = vunpack.c.h.b16 %v550
    %v647 = vpack.c.b16 %v587, %v583
    %v648 = vpack.c.b16 %v588, %v584
    %v649 = vpack.c.b16 %v589, %v585
    %v650 = vpack.c.b16 %v590, %v586
    %v651 = vpack.c.b16 %v595, %v591
    %v652 = vpack.c.b16 %v596, %v592
    %v653 = vpack.c.b16 %v597, %v593
    %v654 = vpack.c.b16 %v598, %v594
    %v655 = vpack.c.b16 %v603, %v599
    %v656 = vpack.c.b16 %v604, %v600
    %v657 = vpack.c.b16 %v605, %v601
    %v658 = vpack.c.b16 %v606, %v602
    %v659 = vpack.c.b16 %v611, %v607
    %v660 = vpack.c.b16 %v612, %v608
    %v661 = vpack.c.b16 %v613, %v609
    %v662 = vpack.c.b16 %v614, %v610
    %v663 = vpack.c.b16 %v619, %v615
    %v664 = vpack.c.b16 %v620, %v616
    %v665 = vpack.c.b16 %v621, %v617
    %v666 = vpack.c.b16 %v622, %v618
    %v667 = vpack.c.b16 %v627, %v623
    %v668 = vpack.c.b16 %v628, %v624
    %v669 = vpack.c.b16 %v629, %v625
    %v670 = vpack.c.b16 %v630, %v626
    %v671 = vpack.c.b16 %v635, %v631
    %v672 = vpack.c.b16 %v636, %v632
    %v673 = vpack.c.b16 %v637, %v633
    %v674 = vpack.c.b16 %v638, %v634
    %v675 = vpack.c.b16 %v643, %v639
    %v676 = vpack.c.b16 %v644, %v640
    %v677 = vpack.c.b16 %v645, %v641
    %v678 = vpack.c.b16 %v646, %v642
    %711 = vmatprep.subr.bf16.mxu0 %v648
    %712 = vmatpush1.bf16.msra.mxu0 %v647
    %713 = vmatprep.subr.bf16.mxu0 %v652
    %714 = vmatpush1.bf16.msra.mxu0 %v651
    %715 = vmatprep.subr.bf16.mxu0 %v656
    %716 = vmatpush1.bf16.msra.mxu0 %v655
    %717 = vmatprep.subr.bf16.mxu0 %v660
    %718 = vmatpush1.bf16.msra.mxu0 %v659
    %719 = vmatprep.subr.bf16.mxu0 %v664
    %720 = vmatpush1.bf16.msra.mxu0 %v663
    %721 = vmatprep.subr.bf16.mxu0 %v668
    %722 = vmatpush1.bf16.msra.mxu0 %v667
    %723 = vmatprep.subr.bf16.mxu0 %v672
    %724 = vmatpush1.bf16.msra.mxu0 %v671
    %725 = vmatprep.subr.bf16.mxu0 %v676
    %726 = vmatpush1.bf16.msra.mxu0 %v675
    %727 = vmatprep.subr.bf16.mxu0 0
    %728 = vmatpush1.bf16.msra.mxu0 0
    %729 = vmatprep.subr.bf16.mxu0 0
    %730 = vmatpush1.bf16.msra.mxu0 0
    %731 = vmatprep.subr.bf16.mxu0 0
    %732 = vmatpush1.bf16.msra.mxu0 0
    %733 = vmatprep.subr.bf16.mxu0 0
    %734 = vmatpush1.bf16.msra.mxu0 0
    %735 = vmatprep.subr.bf16.mxu0 0
    %736 = vmatpush1.bf16.msra.mxu0 0
    %737 = vmatprep.subr.bf16.mxu0 0
    %738 = vmatpush1.bf16.msra.mxu0 0
    %739 = vmatprep.subr.bf16.mxu0 0
    %740 = vmatpush1.bf16.msra.mxu0 0
    %741 = vmatprep.subr.bf16.mxu0 0
    %742 = vmatpush1.bf16.msra.mxu0 0
    %743 = vmatprep.mubr.bf16.mxu0 0
    %744 = vmatmul.mubr.bf16.gmra.mrb[0].mxu0 %v518
    %v745 = vpop.f32.mrb[0].mxu0
    %v746 = vadd.f32 0.0, %v745
    %v747 = vpop.f32.mrb[0].mxu0
    %v748 = vadd.f32 0.0, %v747
    %v749 = vpop.f32.mrb[0].mxu0
    %v750 = vpop.f32.mrb[0].mxu0
    %751 = vdwg.mxu0
    %752 = vmatprep.subr.bf16.mxu0 %v650
    %753 = vmatpush1.bf16.msra.mxu0 %v649
    %754 = vmatprep.subr.bf16.mxu0 %v654
    %755 = vmatpush1.bf16.msra.mxu0 %v653
    %756 = vmatprep.subr.bf16.mxu0 %v658
    %757 = vmatpush1.bf16.msra.mxu0 %v657
    %758 = vmatprep.subr.bf16.mxu0 %v662
    %759 = vmatpush1.bf16.msra.mxu0 %v661
    %760 = vmatprep.subr.bf16.mxu0 %v666
    %761 = vmatpush1.bf16.msra.mxu0 %v665
    %762 = vmatprep.subr.bf16.mxu0 %v670
    %763 = vmatpush1.bf16.msra.mxu0 %v669
    %764 = vmatprep.subr.bf16.mxu0 %v674
    %765 = vmatpush1.bf16.msra.mxu0 %v673
    %766 = vmatprep.subr.bf16.mxu0 %v678
    %767 = vmatpush1.bf16.msra.mxu0 %v677
    %768 = vmatprep.subr.bf16.mxu0 0
    %769 = vmatpush1.bf16.msra.mxu0 0
    %770 = vmatprep.subr.bf16.mxu0 0
    %771 = vmatpush1.bf16.msra.mxu0 0
    %772 = vmatprep.subr.bf16.mxu0 0
    %773 = vmatpush1.bf16.msra.mxu0 0
    %774 = vmatprep.subr.bf16.mxu0 0
    %775 = vmatpush1.bf16.msra.mxu0 0
    %776 = vmatprep.subr.bf16.mxu0 0
    %777 = vmatpush1.bf16.msra.mxu0 0
    %778 = vmatprep.subr.bf16.mxu0 0
    %779 = vmatpush1.bf16.msra.mxu0 0
    %780 = vmatprep.subr.bf16.mxu0 0
    %781 = vmatpush1.bf16.msra.mxu0 0
    %782 = vmatprep.subr.bf16.mxu0 0
    %783 = vmatpush1.bf16.msra.mxu0 0
    %784 = vmatprep.mubr.bf16.mxu0 0
    %785 = vmatmul.mubr.bf16.gmra.mrb[0].mxu0 %v518
    %v786 = vpop.f32.mrb[0].mxu0
    %v787 = vadd.f32 0.0, %v786
    %v788 = vpop.f32.mrb[0].mxu0
    %v789 = vadd.f32 0.0, %v788
    %v790 = vpop.f32.mrb[0].mxu0
    %v791 = vpop.f32.mrb[0].mxu0
    %792 = vdwg.mxu0
    %v793 = vadd.f32 %v514, %v746
    %v794 = vadd.f32 %v515, %v748
    %v795 = vadd.f32 %v516, %v787
    %v796 = vadd.f32 %v517, %v789
    %v797 = vxor.u32 %v793, 2147483648
    %v798 = vmul.f32 %v797, 1.442695
    %v799 = vpow.pop %v798
    %v800 = vadd.f32 %v799, 1.0
    %v801 = vrcp.pop %v800
    %v802 = vmul.f32 1.0, %v801
    %v803 = vxor.u32 %v794, 2147483648
    %v804 = vmul.f32 %v803, 1.442695
    %v805 = vpow.pop %v804
    %v806 = vadd.f32 %v805, 1.0
    %v807 = vrcp.pop %v806
    %v808 = vmul.f32 1.0, %v807
    %v809 = vtanh.pop %v795
    %v810 = vxor.u32 %v796, 2147483648
    %v811 = vmul.f32 %v810, 1.442695
    %v812 = vpow.pop %v811
    %v813 = vadd.f32 %v812, 1.0
    %v814 = vrcp.pop %v813
    %v815 = vmul.f32 1.0, %v814
    %v816 = vmul.f32 %v802, %v809
    %v817 = vmul.f32 %v815, %v509
    %v818 = vadd.f32 %v816, %v817
    %v819 = vtanh.pop %v818
    %v820 = vmul.f32 %v808, %v819
    %821 = vst [vmem:[#allocation3] sm:$0xff] %v820
    %822 = vst [vmem:[#allocation3 + $0x8] sm:$0xff] %v818
    %823 = vst [vmem:[#allocation9] sm:$0xff] %v820
    %s824 = scalar_lea.vmem %s1, 8
    %v825 = vld [vmem:[%s824] sm:$0xff]
    %v826 = vld [vmem:[#allocation3] sm:$0xff]
    %v827 = vld [vmem:[#allocation3 + $0x8] sm:$0xff]
    %v829 = vsel %vm436, %v825, 0
    %831 = vmatprep.subr.mxu0 %v827
    %832 = vmatpush1.msra.mxu0 %v826
    %833 = vmatprep.subr.mxu0 0.0
    %834 = vmatpush1.msra.mxu0 0.0
    %835 = vmatprep.subr.mxu0 0.0
    %836 = vmatpush1.msra.mxu0 0.0
    %837 = vmatprep.subr.mxu0 0.0
    %838 = vmatpush1.msra.mxu0 0.0
    %839 = vmatprep.subr.mxu0 0.0
    %840 = vmatpush1.msra.mxu0 0.0
    %841 = vmatprep.subr.mxu0 0.0
    %842 = vmatpush1.msra.mxu0 0.0
    %843 = vmatprep.subr.mxu0 0.0
    %844 = vmatpush1.msra.mxu0 0.0
    %845 = vmatprep.subr.mxu0 0.0
    %846 = vmatpush1.msra.mxu0 0.0
    %847 = vmatprep.subr.mxu0 0.0
    %848 = vmatpush1.msra.mxu0 0.0
    %849 = vmatprep.subr.mxu0 0.0
    %850 = vmatpush1.msra.mxu0 0.0
    %851 = vmatprep.subr.mxu0 0.0
    %852 = vmatpush1.msra.mxu0 0.0
    %853 = vmatprep.subr.mxu0 0.0
    %854 = vmatpush1.msra.mxu0 0.0
    %855 = vmatprep.subr.mxu0 0.0
    %856 = vmatpush1.msra.mxu0 0.0
    %857 = vmatprep.subr.mxu0 0.0
    %858 = vmatpush1.msra.mxu0 0.0
    %859 = vmatprep.subr.mxu0 0.0
    %860 = vmatpush1.msra.mxu0 0.0
    %861 = vmatprep.subr.mxu0 0.0
    %862 = vmatpush1.msra.mxu0 0.0
    %863 = vmatprep.subr.mxu0 0.0
    %864 = vmatpush1.msra.mxu0 0.0
    %865 = vmatprep.subr.mxu0 0.0
    %866 = vmatpush1.msra.mxu0 0.0
    %867 = vmatprep.subr.mxu0 0.0
    %868 = vmatpush1.msra.mxu0 0.0
    %869 = vmatprep.subr.mxu0 0.0
    %870 = vmatpush1.msra.mxu0 0.0
    %871 = vmatprep.subr.mxu0 0.0
    %872 = vmatpush1.msra.mxu0 0.0
    %873 = vmatprep.subr.mxu0 0.0
    %874 = vmatpush1.msra.mxu0 0.0
    %875 = vmatprep.subr.mxu0 0.0
    %876 = vmatpush1.msra.mxu0 0.0
    %877 = vmatprep.subr.mxu0 0.0
    %878 = vmatpush1.msra.mxu0 0.0
    %879 = vmatprep.subr.mxu0 0.0
    %880 = vmatpush1.msra.mxu0 0.0
    %881 = vmatprep.subr.mxu0 0.0
    %882 = vmatpush1.msra.mxu0 0.0
    %883 = vmatprep.subr.mxu0 0.0
    %884 = vmatpush1.msra.mxu0 0.0
    %885 = vmatprep.subr.mxu0 0.0
    %886 = vmatpush1.msra.mxu0 0.0
    %887 = vmatprep.subr.mxu0 0.0
    %888 = vmatpush1.msra.mxu0 0.0
    %889 = vmatprep.subr.mxu0 0.0
    %890 = vmatpush1.msra.mxu0 0.0
    %891 = vmatprep.subr.mxu0 0.0
    %892 = vmatpush1.msra.mxu0 0.0
    %893 = vmatprep.subr.mxu0 0.0
    %894 = vmatpush1.msra.mxu0 0.0
    %895 = vmatprep.mubr.f32.mxu0 0.0
    %896 = vmatmul.mubr.f32.gmra.mrb[0].mxu0 %v829
    %v897 = vpop.f32.mrb[0].mxu0
    %v898 = vadd.f32 0.0, %v897
    %v899 = vpop.f32.mrb[0].mxu0
    %v900 = vadd.f32 0.0, %v899
    %901 = vdwg.mxu0
    %s902 = smul.u32 1, 4
    %s903 = smul.addr %s902, 8
    %s904 = scalar_lea.vmem [#allocation2], %s903
    %v905 = vld [vmem:[%s904] sm:$0xff]
    %v906 = vld [vmem:[%s904 + $0x8] sm:$0xff]
    %v907 = vld [vmem:[%s904 + $0x10] sm:$0xff]
    %v908 = vld [vmem:[%s904 + $0x18] sm:$0xff]
    %v909 = vpack.c.bf16 %v898, %v898
    %v910 = vld [vmem:[#allocation7] sm:$0xff]
    %v911 = vld [vmem:[#allocation7 + $0x8] sm:$0xff]
    %v912 = vld [vmem:[#allocation7 + $0x10] sm:$0xff]
    %v913 = vld [vmem:[#allocation7 + $0x18] sm:$0xff]
    %v914 = vld [vmem:[#allocation7 + $0x20] sm:$0xff]
    %v915 = vld [vmem:[#allocation7 + $0x28] sm:$0xff]
    %v916 = vld [vmem:[#allocation7 + $0x30] sm:$0xff]
    %v917 = vld [vmem:[#allocation7 + $0x38] sm:$0xff]
    %v918 = vld [vmem:[#allocation7 + $0x40] sm:$0xff]
    %v919 = vld [vmem:[#allocation7 + $0x48] sm:$0xff]
    %v920 = vld [vmem:[#allocation7 + $0x50] sm:$0xff]
    %v921 = vld [vmem:[#allocation7 + $0x58] sm:$0xff]
    %v922 = vld [vmem:[#allocation7 + $0x60] sm:$0xff]
    %v923 = vld [vmem:[#allocation7 + $0x68] sm:$0xff]
    %v924 = vld [vmem:[#allocation7 + $0x70] sm:$0xff]
    %v925 = vld [vmem:[#allocation7 + $0x78] sm:$0xff]
    %v926 = vld [vmem:[#allocation7 + $0x80] sm:$0xff]
    %v927 = vld [vmem:[#allocation7 + $0x88] sm:$0xff]
    %v928 = vld [vmem:[#allocation7 + $0x90] sm:$0xff]
    %v929 = vld [vmem:[#allocation7 + $0x98] sm:$0xff]
    %v930 = vld [vmem:[#allocation7 + $0xa0] sm:$0xff]
    %v931 = vld [vmem:[#allocation7 + $0xa8] sm:$0xff]
    %v932 = vld [vmem:[#allocation7 + $0xb0] sm:$0xff]
    %v933 = vld [vmem:[#allocation7 + $0xb8] sm:$0xff]
    %v934 = vld [vmem:[#allocation7 + $0xc0] sm:$0xff]
    %v935 = vld [vmem:[#allocation7 + $0xc8] sm:$0xff]
    %v936 = vld [vmem:[#allocation7 + $0xd0] sm:$0xff]
    %v937 = vld [vmem:[#allocation7 + $0xd8] sm:$0xff]
    %v938 = vld [vmem:[#allocation7 + $0xe0] sm:$0xff]
    %v939 = vld [vmem:[#allocation7 + $0xe8] sm:$0xff]
    %v940 = vld [vmem:[#allocation7 + $0xf0] sm:$0xff]
    %v941 = vld [vmem:[#allocation7 + $0xf8] sm:$0xff]
    %v974 = vunpack.c.l.b16 %v910
    %v975 = vunpack.c.h.b16 %v910
    %v976 = vunpack.c.l.b16 %v911
    %v977 = vunpack.c.h.b16 %v911
    %v978 = vunpack.c.l.b16 %v912
    %v979 = vunpack.c.h.b16 %v912
    %v980 = vunpack.c.l.b16 %v913
    %v981 = vunpack.c.h.b16 %v913
    %v982 = vunpack.c.l.b16 %v914
    %v983 = vunpack.c.h.b16 %v914
    %v984 = vunpack.c.l.b16 %v915
    %v985 = vunpack.c.h.b16 %v915
    %v986 = vunpack.c.l.b16 %v916
    %v987 = vunpack.c.h.b16 %v916
    %v988 = vunpack.c.l.b16 %v917
    %v989 = vunpack.c.h.b16 %v917
    %v990 = vunpack.c.l.b16 %v918
    %v991 = vunpack.c.h.b16 %v918
    %v992 = vunpack.c.l.b16 %v919
    %v993 = vunpack.c.h.b16 %v919
    %v994 = vunpack.c.l.b16 %v920
    %v995 = vunpack.c.h.b16 %v920
    %v996 = vunpack.c.l.b16 %v921
    %v997 = vunpack.c.h.b16 %v921
    %v998 = vunpack.c.l.b16 %v922
    %v999 = vunpack.c.h.b16 %v922
    %v1000 = vunpack.c.l.b16 %v923
    %v1001 = vunpack.c.h.b16 %v923
    %v1002 = vunpack.c.l.b16 %v924
    %v1003 = vunpack.c.h.b16 %v924
    %v1004 = vunpack.c.l.b16 %v925
    %v1005 = vunpack.c.h.b16 %v925
    %v1006 = vunpack.c.l.b16 %v926
    %v1007 = vunpack.c.h.b16 %v926
    %v1008 = vunpack.c.l.b16 %v927
    %v1009 = vunpack.c.h.b16 %v927
    %v1010 = vunpack.c.l.b16 %v928
    %v1011 = vunpack.c.h.b16 %v928
    %v1012 = vunpack.c.l.b16 %v929
    %v1013 = vunpack.c.h.b16 %v929
    %v1014 = vunpack.c.l.b16 %v930
    %v1015 = vunpack.c.h.b16 %v930
    %v1016 = vunpack.c.l.b16 %v931
    %v1017 = vunpack.c.h.b16 %v931
    %v1018 = vunpack.c.l.b16 %v932
    %v1019 = vunpack.c.h.b16 %v932
    %v1020 = vunpack.c.l.b16 %v933
    %v1021 = vunpack.c.h.b16 %v933
    %v1022 = vunpack.c.l.b16 %v934
    %v1023 = vunpack.c.h.b16 %v934
    %v1024 = vunpack.c.l.b16 %v935
    %v1025 = vunpack.c.h.b16 %v935
    %v1026 = vunpack.c.l.b16 %v936
    %v1027 = vunpack.c.h.b16 %v936
    %v1028 = vunpack.c.l.b16 %v937
    %v1029 = vunpack.c.h.b16 %v937
    %v1030 = vunpack.c.l.b16 %v938
    %v1031 = vunpack.c.h.b16 %v938
    %v1032 = vunpack.c.l.b16 %v939
    %v1033 = vunpack.c.h.b16 %v939
    %v1034 = vunpack.c.l.b16 %v940
    %v1035 = vunpack.c.h.b16 %v940
    %v1036 = vunpack.c.l.b16 %v941
    %v1037 = vunpack.c.h.b16 %v941
    %v1038 = vpack.c.b16 %v978, %v974
    %v1039 = vpack.c.b16 %v979, %v975
    %v1040 = vpack.c.b16 %v980, %v976
    %v1041 = vpack.c.b16 %v981, %v977
    %v1042 = vpack.c.b16 %v986, %v982
    %v1043 = vpack.c.b16 %v987, %v983
    %v1044 = vpack.c.b16 %v988, %v984
    %v1045 = vpack.c.b16 %v989, %v985
    %v1046 = vpack.c.b16 %v994, %v990
    %v1047 = vpack.c.b16 %v995, %v991
    %v1048 = vpack.c.b16 %v996, %v992
    %v1049 = vpack.c.b16 %v997, %v993
    %v1050 = vpack.c.b16 %v1002, %v998
    %v1051 = vpack.c.b16 %v1003, %v999
    %v1052 = vpack.c.b16 %v1004, %v1000
    %v1053 = vpack.c.b16 %v1005, %v1001
    %v1054 = vpack.c.b16 %v1010, %v1006
    %v1055 = vpack.c.b16 %v1011, %v1007
    %v1056 = vpack.c.b16 %v1012, %v1008
    %v1057 = vpack.c.b16 %v1013, %v1009
    %v1058 = vpack.c.b16 %v1018, %v1014
    %v1059 = vpack.c.b16 %v1019, %v1015
    %v1060 = vpack.c.b16 %v1020, %v1016
    %v1061 = vpack.c.b16 %v1021, %v1017
    %v1062 = vpack.c.b16 %v1026, %v1022
    %v1063 = vpack.c.b16 %v1027, %v1023
    %v1064 = vpack.c.b16 %v1028, %v1024
    %v1065 = vpack.c.b16 %v1029, %v1025
    %v1066 = vpack.c.b16 %v1034, %v1030
    %v1067 = vpack.c.b16 %v1035, %v1031
    %v1068 = vpack.c.b16 %v1036, %v1032
    %v1069 = vpack.c.b16 %v1037, %v1033
    %1102 = vmatprep.subr.bf16.mxu0 %v1039
    %1103 = vmatpush1.bf16.msra.mxu0 %v1038
    %1104 = vmatprep.subr.bf16.mxu0 %v1043
    %1105 = vmatpush1.bf16.msra.mxu0 %v1042
    %1106 = vmatprep.subr.bf16.mxu0 %v1047
    %1107 = vmatpush1.bf16.msra.mxu0 %v1046
    %1108 = vmatprep.subr.bf16.mxu0 %v1051
    %1109 = vmatpush1.bf16.msra.mxu0 %v1050
    %1110 = vmatprep.subr.bf16.mxu0 %v1055
    %1111 = vmatpush1.bf16.msra.mxu0 %v1054
    %1112 = vmatprep.subr.bf16.mxu0 %v1059
    %1113 = vmatpush1.bf16.msra.mxu0 %v1058
    %1114 = vmatprep.subr.bf16.mxu0 %v1063
    %1115 = vmatpush1.bf16.msra.mxu0 %v1062
    %1116 = vmatprep.subr.bf16.mxu0 %v1067
    %1117 = vmatpush1.bf16.msra.mxu0 %v1066
    %1118 = vmatprep.subr.bf16.mxu0 0
    %1119 = vmatpush1.bf16.msra.mxu0 0
    %1120 = vmatprep.subr.bf16.mxu0 0
    %1121 = vmatpush1.bf16.msra.mxu0 0
    %1122 = vmatprep.subr.bf16.mxu0 0
    %1123 = vmatpush1.bf16.msra.mxu0 0
    %1124 = vmatprep.subr.bf16.mxu0 0
    %1125 = vmatpush1.bf16.msra.mxu0 0
    %1126 = vmatprep.subr.bf16.mxu0 0
    %1127 = vmatpush1.bf16.msra.mxu0 0
    %1128 = vmatprep.subr.bf16.mxu0 0
    %1129 = vmatpush1.bf16.msra.mxu0 0
    %1130 = vmatprep.subr.bf16.mxu0 0
    %1131 = vmatpush1.bf16.msra.mxu0 0
    %1132 = vmatprep.subr.bf16.mxu0 0
    %1133 = vmatpush1.bf16.msra.mxu0 0
    %1134 = vmatprep.mubr.bf16.mxu0 0
    %1135 = vmatmul.mubr.bf16.gmra.mrb[0].mxu0 %v909
    %v1136 = vpop.f32.mrb[0].mxu0
    %v1137 = vadd.f32 0.0, %v1136
    %v1138 = vpop.f32.mrb[0].mxu0
    %v1139 = vadd.f32 0.0, %v1138
    %v1140 = vpop.f32.mrb[0].mxu0
    %v1141 = vpop.f32.mrb[0].mxu0
    %1142 = vdwg.mxu0
    %1143 = vmatprep.subr.bf16.mxu0 %v1041
    %1144 = vmatpush1.bf16.msra.mxu0 %v1040
    %1145 = vmatprep.subr.bf16.mxu0 %v1045
    %1146 = vmatpush1.bf16.msra.mxu0 %v1044
    %1147 = vmatprep.subr.bf16.mxu0 %v1049
    %1148 = vmatpush1.bf16.msra.mxu0 %v1048
    %1149 = vmatprep.subr.bf16.mxu0 %v1053
    %1150 = vmatpush1.bf16.msra.mxu0 %v1052
    %1151 = vmatprep.subr.bf16.mxu0 %v1057
    %1152 = vmatpush1.bf16.msra.mxu0 %v1056
    %1153 = vmatprep.subr.bf16.mxu0 %v1061
    %1154 = vmatpush1.bf16.msra.mxu0 %v1060
    %1155 = vmatprep.subr.bf16.mxu0 %v1065
    %1156 = vmatpush1.bf16.msra.mxu0 %v1064
    %1157 = vmatprep.subr.bf16.mxu0 %v1069
    %1158 = vmatpush1.bf16.msra.mxu0 %v1068
    %1159 = vmatprep.subr.bf16.mxu0 0
    %1160 = vmatpush1.bf16.msra.mxu0 0
    %1161 = vmatprep.subr.bf16.mxu0 0
    %1162 = vmatpush1.bf16.msra.mxu0 0
    %1163 = vmatprep.subr.bf16.mxu0 0
    %1164 = vmatpush1.bf16.msra.mxu0 0
    %1165 = vmatprep.subr.bf16.mxu0 0
    %1166 = vmatpush1.bf16.msra.mxu0 0
    %1167 = vmatprep.subr.bf16.mxu0 0
    %1168 = vmatpush1.bf16.msra.mxu0 0
    %1169 = vmatprep.subr.bf16.mxu0 0
    %1170 = vmatpush1.bf16.msra.mxu0 0
    %1171 = vmatprep.subr.bf16.mxu0 0
    %1172 = vmatpush1.bf16.msra.mxu0 0
    %1173 = vmatprep.subr.bf16.mxu0 0
    %1174 = vmatpush1.bf16.msra.mxu0 0
    %1175 = vmatprep.mubr.bf16.mxu0 0
    %1176 = vmatmul.mubr.bf16.gmra.mrb[0].mxu0 %v909
    %v1177 = vpop.f32.mrb[0].mxu0
    %v1178 = vadd.f32 0.0, %v1177
    %v1179 = vpop.f32.mrb[0].mxu0
    %v1180 = vadd.f32 0.0, %v1179
    %v1181 = vpop.f32.mrb[0].mxu0
    %v1182 = vpop.f32.mrb[0].mxu0
    %1183 = vdwg.mxu0
    %v1184 = vadd.f32 %v905, %v1137
    %v1185 = vadd.f32 %v906, %v1139
    %v1186 = vadd.f32 %v907, %v1178
    %v1187 = vadd.f32 %v908, %v1180
    %v1188 = vxor.u32 %v1184, 2147483648
    %v1189 = vmul.f32 %v1188, 1.442695
    %v1190 = vpow.pop %v1189
    %v1191 = vadd.f32 %v1190, 1.0
    %v1192 = vrcp.pop %v1191
    %v1193 = vmul.f32 1.0, %v1192
    %v1194 = vxor.u32 %v1185, 2147483648
    %v1195 = vmul.f32 %v1194, 1.442695
    %v1196 = vpow.pop %v1195
    %v1197 = vadd.f32 %v1196, 1.0
    %v1198 = vrcp.pop %v1197
    %v1199 = vmul.f32 1.0, %v1198
    %v1200 = vtanh.pop %v1186
    %v1201 = vxor.u32 %v1187, 2147483648
    %v1202 = vmul.f32 %v1201, 1.442695
    %v1203 = vpow.pop %v1202
    %v1204 = vadd.f32 %v1203, 1.0
    %v1205 = vrcp.pop %v1204
    %v1206 = vmul.f32 1.0, %v1205
    %v1207 = vmul.f32 %v1193, %v1200
    %v1208 = vmul.f32 %v1206, %v900
    %v1209 = vadd.f32 %v1207, %v1208
    %v1210 = vtanh.pop %v1209
    %v1211 = vmul.f32 %v1199, %v1210
    %1212 = vst [vmem:[#allocation3] sm:$0xff] %v1211
    %1213 = vst [vmem:[#allocation3 + $0x8] sm:$0xff] %v1209
    %s1214 = scalar_lea.vmem [#allocation9], 8
    %1215 = vst [vmem:[%s1214] sm:$0xff] %v1211
    %s1216 = scalar_lea.vmem %s1, 16
    %v1217 = vld [vmem:[%s1216] sm:$0xff]
    %v1218 = vld [vmem:[#allocation3] sm:$0xff]
    %v1219 = vld [vmem:[#allocation3 + $0x8] sm:$0xff]
    %v1221 = vsel %vm436, %v1217, 0
    %1223 = vmatprep.subr.mxu0 %v1219
    %1224 = vmatpush1.msra.mxu0 %v1218
    %1225 = vmatprep.subr.mxu0 0.0
    %1226 = vmatpush1.msra.mxu0 0.0
    %1227 = vmatprep.subr.mxu0 0.0
    %1228 = vmatpush1.msra.mxu0 0.0
    %1229 = vmatprep.subr.mxu0 0.0
    %1230 = vmatpush1.msra.mxu0 0.0
    %1231 = vmatprep.subr.mxu0 0.0
    %1232 = vmatpush1.msra.mxu0 0.0
    %1233 = vmatprep.subr.mxu0 0.0
    %1234 = vmatpush1.msra.mxu0 0.0
    %1235 = vmatprep.subr.mxu0 0.0
    %1236 = vmatpush1.msra.mxu0 0.0
    %1237 = vmatprep.subr.mxu0 0.0
    %1238 = vmatpush1.msra.mxu0 0.0
    %1239 = vmatprep.subr.mxu0 0.0
    %1240 = vmatpush1.msra.mxu0 0.0
    %1241 = vmatprep.subr.mxu0 0.0
    %1242 = vmatpush1.msra.mxu0 0.0
    %1243 = vmatprep.subr.mxu0 0.0
    %1244 = vmatpush1.msra.mxu0 0.0
    %1245 = vmatprep.subr.mxu0 0.0
    %1246 = vmatpush1.msra.mxu0 0.0
    %1247 = vmatprep.subr.mxu0 0.0
    %1248 = vmatpush1.msra.mxu0 0.0
    %1249 = vmatprep.subr.mxu0 0.0
    %1250 = vmatpush1.msra.mxu0 0.0
    %1251 = vmatprep.subr.mxu0 0.0
    %1252 = vmatpush1.msra.mxu0 0.0
    %1253 = vmatprep.subr.mxu0 0.0
    %1254 = vmatpush1.msra.mxu0 0.0
    %1255 = vmatprep.subr.mxu0 0.0
    %1256 = vmatpush1.msra.mxu0 0.0
    %1257 = vmatprep.subr.mxu0 0.0
    %1258 = vmatpush1.msra.mxu0 0.0
    %1259 = vmatprep.subr.mxu0 0.0
    %1260 = vmatpush1.msra.mxu0 0.0
    %1261 = vmatprep.subr.mxu0 0.0
    %1262 = vmatpush1.msra.mxu0 0.0
    %1263 = vmatprep.subr.mxu0 0.0
    %1264 = vmatpush1.msra.mxu0 0.0
    %1265 = vmatprep.subr.mxu0 0.0
    %1266 = vmatpush1.msra.mxu0 0.0
    %1267 = vmatprep.subr.mxu0 0.0
    %1268 = vmatpush1.msra.mxu0 0.0
    %1269 = vmatprep.subr.mxu0 0.0
    %1270 = vmatpush1.msra.mxu0 0.0
    %1271 = vmatprep.subr.mxu0 0.0
    %1272 = vmatpush1.msra.mxu0 0.0
    %1273 = vmatprep.subr.mxu0 0.0
    %1274 = vmatpush1.msra.mxu0 0.0
    %1275 = vmatprep.subr.mxu0 0.0
    %1276 = vmatpush1.msra.mxu0 0.0
    %1277 = vmatprep.subr.mxu0 0.0
    %1278 = vmatpush1.msra.mxu0 0.0
    %1279 = vmatprep.subr.mxu0 0.0
    %1280 = vmatpush1.msra.mxu0 0.0
    %1281 = vmatprep.subr.mxu0 0.0
    %1282 = vmatpush1.msra.mxu0 0.0
    %1283 = vmatprep.subr.mxu0 0.0
    %1284 = vmatpush1.msra.mxu0 0.0
    %1285 = vmatprep.subr.mxu0 0.0
    %1286 = vmatpush1.msra.mxu0 0.0
    %1287 = vmatprep.mubr.f32.mxu0 0.0
    %1288 = vmatmul.mubr.f32.gmra.mrb[0].mxu0 %v1221
    %v1289 = vpop.f32.mrb[0].mxu0
    %v1290 = vadd.f32 0.0, %v1289
    %v1291 = vpop.f32.mrb[0].mxu0
    %v1292 = vadd.f32 0.0, %v1291
    %1293 = vdwg.mxu0
    %s1294 = smul.u32 2, 4
    %s1295 = smul.addr %s1294, 8
    %s1296 = scalar_lea.vmem [#allocation2], %s1295
    %v1297 = vld [vmem:[%s1296] sm:$0xff]
    %v1298 = vld [vmem:[%s1296 + $0x8] sm:$0xff]
    %v1299 = vld [vmem:[%s1296 + $0x10] sm:$0xff]
    %v1300 = vld [vmem:[%s1296 + $0x18] sm:$0xff]
    %v1301 = vpack.c.bf16 %v1290, %v1290
    %v1302 = vld [vmem:[#allocation7] sm:$0xff]
    %v1303 = vld [vmem:[#allocation7 + $0x8] sm:$0xff]
    %v1304 = vld [vmem:[#allocation7 + $0x10] sm:$0xff]
    %v1305 = vld [vmem:[#allocation7 + $0x18] sm:$0xff]
    %v1306 = vld [vmem:[#allocation7 + $0x20] sm:$0xff]
    %v1307 = vld [vmem:[#allocation7 + $0x28] sm:$0xff]
    %v1308 = vld [vmem:[#allocation7 + $0x30] sm:$0xff]
    %v1309 = vld [vmem:[#allocation7 + $0x38] sm:$0xff]
    %v1310 = vld [vmem:[#allocation7 + $0x40] sm:$0xff]
    %v1311 = vld [vmem:[#allocation7 + $0x48] sm:$0xff]
    %v1312 = vld [vmem:[#allocation7 + $0x50] sm:$0xff]
    %v1313 = vld [vmem:[#allocation7 + $0x58] sm:$0xff]
    %v1314 = vld [vmem:[#allocation7 + $0x60] sm:$0xff]
    %v1315 = vld [vmem:[#allocation7 + $0x68] sm:$0xff]
    %v1316 = vld [vmem:[#allocation7 + $0x70] sm:$0xff]
    %v1317 = vld [vmem:[#allocation7 + $0x78] sm:$0xff]
    %v1318 = vld [vmem:[#allocation7 + $0x80] sm:$0xff]
    %v1319 = vld [vmem:[#allocation7 + $0x88] sm:$0xff]
    %v1320 = vld [vmem:[#allocation7 + $0x90] sm:$0xff]
    %v1321 = vld [vmem:[#allocation7 + $0x98] sm:$0xff]
    %v1322 = vld [vmem:[#allocation7 + $0xa0] sm:$0xff]
    %v1323 = vld [vmem:[#allocation7 + $0xa8] sm:$0xff]
    %v1324 = vld [vmem:[#allocation7 + $0xb0] sm:$0xff]
    %v1325 = vld [vmem:[#allocation7 + $0xb8] sm:$0xff]
    %v1326 = vld [vmem:[#allocation7 + $0xc0] sm:$0xff]
    %v1327 = vld [vmem:[#allocation7 + $0xc8] sm:$0xff]
    %v1328 = vld [vmem:[#allocation7 + $0xd0] sm:$0xff]
    %v1329 = vld [vmem:[#allocation7 + $0xd8] sm:$0xff]
    %v1330 = vld [vmem:[#allocation7 + $0xe0] sm:$0xff]
    %v1331 = vld [vmem:[#allocation7 + $0xe8] sm:$0xff]
    %v1332 = vld [vmem:[#allocation7 + $0xf0] sm:$0xff]
    %v1333 = vld [vmem:[#allocation7 + $0xf8] sm:$0xff]
    %v1366 = vunpack.c.l.b16 %v1302
    %v1367 = vunpack.c.h.b16 %v1302
    %v1368 = vunpack.c.l.b16 %v1303
    %v1369 = vunpack.c.h.b16 %v1303
    %v1370 = vunpack.c.l.b16 %v1304
    %v1371 = vunpack.c.h.b16 %v1304
    %v1372 = vunpack.c.l.b16 %v1305
    %v1373 = vunpack.c.h.b16 %v1305
    %v1374 = vunpack.c.l.b16 %v1306
    %v1375 = vunpack.c.h.b16 %v1306
    %v1376 = vunpack.c.l.b16 %v1307
    %v1377 = vunpack.c.h.b16 %v1307
    %v1378 = vunpack.c.l.b16 %v1308
    %v1379 = vunpack.c.h.b16 %v1308
    %v1380 = vunpack.c.l.b16 %v1309
    %v1381 = vunpack.c.h.b16 %v1309
    %v1382 = vunpack.c.l.b16 %v1310
    %v1383 = vunpack.c.h.b16 %v1310
    %v1384 = vunpack.c.l.b16 %v1311
    %v1385 = vunpack.c.h.b16 %v1311
    %v1386 = vunpack.c.l.b16 %v1312
    %v1387 = vunpack.c.h.b16 %v1312
    %v1388 = vunpack.c.l.b16 %v1313
    %v1389 = vunpack.c.h.b16 %v1313
    %v1390 = vunpack.c.l.b16 %v1314
    %v1391 = vunpack.c.h.b16 %v1314
    %v1392 = vunpack.c.l.b16 %v1315
    %v1393 = vunpack.c.h.b16 %v1315
    %v1394 = vunpack.c.l.b16 %v1316
    %v1395 = vunpack.c.h.b16 %v1316
    %v1396 = vunpack.c.l.b16 %v1317
    %v1397 = vunpack.c.h.b16 %v1317
    %v1398 = vunpack.c.l.b16 %v1318
    %v1399 = vunpack.c.h.b16 %v1318
    %v1400 = vunpack.c.l.b16 %v1319
    %v1401 = vunpack.c.h.b16 %v1319
    %v1402 = vunpack.c.l.b16 %v1320
    %v1403 = vunpack.c.h.b16 %v1320
    %v1404 = vunpack.c.l.b16 %v1321
    %v1405 = vunpack.c.h.b16 %v1321
    %v1406 = vunpack.c.l.b16 %v1322
    %v1407 = vunpack.c.h.b16 %v1322
    %v1408 = vunpack.c.l.b16 %v1323
    %v1409 = vunpack.c.h.b16 %v1323
    %v1410 = vunpack.c.l.b16 %v1324
    %v1411 = vunpack.c.h.b16 %v1324
    %v1412 = vunpack.c.l.b16 %v1325
    %v1413 = vunpack.c.h.b16 %v1325
    %v1414 = vunpack.c.l.b16 %v1326
    %v1415 = vunpack.c.h.b16 %v1326
    %v1416 = vunpack.c.l.b16 %v1327
    %v1417 = vunpack.c.h.b16 %v1327
    %v1418 = vunpack.c.l.b16 %v1328
    %v1419 = vunpack.c.h.b16 %v1328
    %v1420 = vunpack.c.l.b16 %v1329
    %v1421 = vunpack.c.h.b16 %v1329
    %v1422 = vunpack.c.l.b16 %v1330
    %v1423 = vunpack.c.h.b16 %v1330
    %v1424 = vunpack.c.l.b16 %v1331
    %v1425 = vunpack.c.h.b16 %v1331
    %v1426 = vunpack.c.l.b16 %v1332
    %v1427 = vunpack.c.h.b16 %v1332
    %v1428 = vunpack.c.l.b16 %v1333
    %v1429 = vunpack.c.h.b16 %v1333
    %v1430 = vpack.c.b16 %v1370, %v1366
    %v1431 = vpack.c.b16 %v1371, %v1367
    %v1432 = vpack.c.b16 %v1372, %v1368
    %v1433 = vpack.c.b16 %v1373, %v1369
    %v1434 = vpack.c.b16 %v1378, %v1374
    %v1435 = vpack.c.b16 %v1379, %v1375
    %v1436 = vpack.c.b16 %v1380, %v1376
    %v1437 = vpack.c.b16 %v1381, %v1377
    %v1438 = vpack.c.b16 %v1386, %v1382
    %v1439 = vpack.c.b16 %v1387, %v1383
    %v1440 = vpack.c.b16 %v1388, %v1384
    %v1441 = vpack.c.b16 %v1389, %v1385
    %v1442 = vpack.c.b16 %v1394, %v1390
    %v1443 = vpack.c.b16 %v1395, %v1391
    %v1444 = vpack.c.b16 %v1396, %v1392
    %v1445 = vpack.c.b16 %v1397, %v1393
    %v1446 = vpack.c.b16 %v1402, %v1398
    %v1447 = vpack.c.b16 %v1403, %v1399
    %v1448 = vpack.c.b16 %v1404, %v1400
    %v1449 = vpack.c.b16 %v1405, %v1401
    %v1450 = vpack.c.b16 %v1410, %v1406
    %v1451 = vpack.c.b16 %v1411, %v1407
    %v1452 = vpack.c.b16 %v1412, %v1408
    %v1453 = vpack.c.b16 %v1413, %v1409
    %v1454 = vpack.c.b16 %v1418, %v1414
    %v1455 = vpack.c.b16 %v1419, %v1415
    %v1456 = vpack.c.b16 %v1420, %v1416
    %v1457 = vpack.c.b16 %v1421, %v1417
    %v1458 = vpack.c.b16 %v1426, %v1422
    %v1459 = vpack.c.b16 %v1427, %v1423
    %v1460 = vpack.c.b16 %v1428, %v1424
    %v1461 = vpack.c.b16 %v1429, %v1425
    %1494 = vmatprep.subr.bf16.mxu0 %v1431
    %1495 = vmatpush1.bf16.msra.mxu0 %v1430
    %1496 = vmatprep.subr.bf16.mxu0 %v1435
    %1497 = vmatpush1.bf16.msra.mxu0 %v1434
    %1498 = vmatprep.subr.bf16.mxu0 %v1439
    %1499 = vmatpush1.bf16.msra.mxu0 %v1438
    %1500 = vmatprep.subr.bf16.mxu0 %v1443
    %1501 = vmatpush1.bf16.msra.mxu0 %v1442
    %1502 = vmatprep.subr.bf16.mxu0 %v1447
    %1503 = vmatpush1.bf16.msra.mxu0 %v1446
    %1504 = vmatprep.subr.bf16.mxu0 %v1451
    %1505 = vmatpush1.bf16.msra.mxu0 %v1450
    %1506 = vmatprep.subr.bf16.mxu0 %v1455
    %1507 = vmatpush1.bf16.msra.mxu0 %v1454
    %1508 = vmatprep.subr.bf16.mxu0 %v1459
    %1509 = vmatpush1.bf16.msra.mxu0 %v1458
    %1510 = vmatprep.subr.bf16.mxu0 0
    %1511 = vmatpush1.bf16.msra.mxu0 0
    %1512 = vmatprep.subr.bf16.mxu0 0
    %1513 = vmatpush1.bf16.msra.mxu0 0
    %1514 = vmatprep.subr.bf16.mxu0 0
    %1515 = vmatpush1.bf16.msra.mxu0 0
    %1516 = vmatprep.subr.bf16.mxu0 0
    %1517 = vmatpush1.bf16.msra.mxu0 0
    %1518 = vmatprep.subr.bf16.mxu0 0
    %1519 = vmatpush1.bf16.msra.mxu0 0
    %1520 = vmatprep.subr.bf16.mxu0 0
    %1521 = vmatpush1.bf16.msra.mxu0 0
    %1522 = vmatprep.subr.bf16.mxu0 0
    %1523 = vmatpush1.bf16.msra.mxu0 0
    %1524 = vmatprep.subr.bf16.mxu0 0
    %1525 = vmatpush1.bf16.msra.mxu0 0
    %1526 = vmatprep.mubr.bf16.mxu0 0
    %1527 = vmatmul.mubr.bf16.gmra.mrb[0].mxu0 %v1301
    %v1528 = vpop.f32.mrb[0].mxu0
    %v1529 = vadd.f32 0.0, %v1528
    %v1530 = vpop.f32.mrb[0].mxu0
    %v1531 = vadd.f32 0.0, %v1530
    %v1532 = vpop.f32.mrb[0].mxu0
    %v1533 = vpop.f32.mrb[0].mxu0
    %1534 = vdwg.mxu0
    %1535 = vmatprep.subr.bf16.mxu0 %v1433
    %1536 = vmatpush1.bf16.msra.mxu0 %v1432
    %1537 = vmatprep.subr.bf16.mxu0 %v1437
    %1538 = vmatpush1.bf16.msra.mxu0 %v1436
    %1539 = vmatprep.subr.bf16.mxu0 %v1441
    %1540 = vmatpush1.bf16.msra.mxu0 %v1440
    %1541 = vmatprep.subr.bf16.mxu0 %v1445
    %1542 = vmatpush1.bf16.msra.mxu0 %v1444
    %1543 = vmatprep.subr.bf16.mxu0 %v1449
    %1544 = vmatpush1.bf16.msra.mxu0 %v1448
    %1545 = vmatprep.subr.bf16.mxu0 %v1453
    %1546 = vmatpush1.bf16.msra.mxu0 %v1452
    %1547 = vmatprep.subr.bf16.mxu0 %v1457
    %1548 = vmatpush1.bf16.msra.mxu0 %v1456
    %1549 = vmatprep.subr.bf16.mxu0 %v1461
    %1550 = vmatpush1.bf16.msra.mxu0 %v1460
    %1551 = vmatprep.subr.bf16.mxu0 0
    %1552 = vmatpush1.bf16.msra.mxu0 0
    %1553 = vmatprep.subr.bf16.mxu0 0
    %1554 = vmatpush1.bf16.msra.mxu0 0
    %1555 = vmatprep.subr.bf16.mxu0 0
    %1556 = vmatpush1.bf16.msra.mxu0 0
    %1557 = vmatprep.subr.bf16.mxu0 0
    %1558 = vmatpush1.bf16.msra.mxu0 0
    %1559 = vmatprep.subr.bf16.mxu0 0
    %1560 = vmatpush1.bf16.msra.mxu0 0
    %1561 = vmatprep.subr.bf16.mxu0 0
    %1562 = vmatpush1.bf16.msra.mxu0 0
    %1563 = vmatprep.subr.bf16.mxu0 0
    %1564 = vmatpush1.bf16.msra.mxu0 0
    %1565 = vmatprep.subr.bf16.mxu0 0
    %1566 = vmatpush1.bf16.msra.mxu0 0
    %1567 = vmatprep.mubr.bf16.mxu0 0
    %1568 = vmatmul.mubr.bf16.gmra.mrb[0].mxu0 %v1301
    %v1569 = vpop.f32.mrb[0].mxu0
    %v1570 = vadd.f32 0.0, %v1569
    %v1571 = vpop.f32.mrb[0].mxu0
    %v1572 = vadd.f32 0.0, %v1571
    %v1573 = vpop.f32.mrb[0].mxu0
    %v1574 = vpop.f32.mrb[0].mxu0
    %1575 = vdwg.mxu0
    %v1576 = vadd.f32 %v1297, %v1529
    %v1577 = vadd.f32 %v1298, %v1531
    %v1578 = vadd.f32 %v1299, %v1570
    %v1579 = vadd.f32 %v1300, %v1572
    %v1580 = vxor.u32 %v1576, 2147483648
    %v1581 = vmul.f32 %v1580, 1.442695
    %v1582 = vpow.pop %v1581
    %v1583 = vadd.f32 %v1582, 1.0
    %v1584 = vrcp.pop %v1583
    %v1585 = vmul.f32 1.0, %v1584
    %v1586 = vxor.u32 %v1577, 2147483648
    %v1587 = vmul.f32 %v1586, 1.442695
    %v1588 = vpow.pop %v1587
    %v1589 = vadd.f32 %v1588, 1.0
    %v1590 = vrcp.pop %v1589
    %v1591 = vmul.f32 1.0, %v1590
    %v1592 = vtanh.pop %v1578
    %v1593 = vxor.u32 %v1579, 2147483648
    %v1594 = vmul.f32 %v1593, 1.442695
    %v1595 = vpow.pop %v1594
    %v1596 = vadd.f32 %v1595, 1.0
    %v1597 = vrcp.pop %v1596
    %v1598 = vmul.f32 1.0, %v1597
    %v1599 = vmul.f32 %v1585, %v1592
    %v1600 = vmul.f32 %v1598, %v1292
    %v1601 = vadd.f32 %v1599, %v1600
    %v1602 = vtanh.pop %v1601
    %v1603 = vmul.f32 %v1591, %v1602
    %1604 = vst [vmem:[#allocation3] sm:$0xff] %v1603
    %1605 = vst [vmem:[#allocation3 + $0x8] sm:$0xff] %v1601
    %s1606 = scalar_lea.vmem [#allocation9], 16
    %1607 = vst [vmem:[%s1606] sm:$0xff] %v1603
    %s1608 = scalar_lea.vmem %s1, 24
    %v1609 = vld [vmem:[%s1608] sm:$0xff]
    %v1610 = vld [vmem:[#allocation3] sm:$0xff]
    %v1611 = vld [vmem:[#allocation3 + $0x8] sm:$0xff]
    %v1613 = vsel %vm436, %v1609, 0
    %1615 = vmatprep.subr.mxu0 %v1611
    %1616 = vmatpush1.msra.mxu0 %v1610
    %1617 = vmatprep.subr.mxu0 0.0
    %1618 = vmatpush1.msra.mxu0 0.0
    %1619 = vmatprep.subr.mxu0 0.0
    %1620 = vmatpush1.msra.mxu0 0.0
    %1621 = vmatprep.subr.mxu0 0.0
    %1622 = vmatpush1.msra.mxu0 0.0
    %1623 = vmatprep.subr.mxu0 0.0
    %1624 = vmatpush1.msra.mxu0 0.0
    %1625 = vmatprep.subr.mxu0 0.0
    %1626 = vmatpush1.msra.mxu0 0.0
    %1627 = vmatprep.subr.mxu0 0.0
    %1628 = vmatpush1.msra.mxu0 0.0
    %1629 = vmatprep.subr.mxu0 0.0
    %1630 = vmatpush1.msra.mxu0 0.0
    %1631 = vmatprep.subr.mxu0 0.0
    %1632 = vmatpush1.msra.mxu0 0.0
    %1633 = vmatprep.subr.mxu0 0.0
    %1634 = vmatpush1.msra.mxu0 0.0
    %1635 = vmatprep.subr.mxu0 0.0
    %1636 = vmatpush1.msra.mxu0 0.0
    %1637 = vmatprep.subr.mxu0 0.0
    %1638 = vmatpush1.msra.mxu0 0.0
    %1639 = vmatprep.subr.mxu0 0.0
    %1640 = vmatpush1.msra.mxu0 0.0
    %1641 = vmatprep.subr.mxu0 0.0
    %1642 = vmatpush1.msra.mxu0 0.0
    %1643 = vmatprep.subr.mxu0 0.0
    %1644 = vmatpush1.msra.mxu0 0.0
    %1645 = vmatprep.subr.mxu0 0.0
    %1646 = vmatpush1.msra.mxu0 0.0
    %1647 = vmatprep.subr.mxu0 0.0
    %1648 = vmatpush1.msra.mxu0 0.0
    %1649 = vmatprep.subr.mxu0 0.0
    %1650 = vmatpush1.msra.mxu0 0.0
    %1651 = vmatprep.subr.mxu0 0.0
    %1652 = vmatpush1.msra.mxu0 0.0
    %1653 = vmatprep.subr.mxu0 0.0
    %1654 = vmatpush1.msra.mxu0 0.0
    %1655 = vmatprep.subr.mxu0 0.0
    %1656 = vmatpush1.msra.mxu0 0.0
    %1657 = vmatprep.subr.mxu0 0.0
    %1658 = vmatpush1.msra.mxu0 0.0
    %1659 = vmatprep.subr.mxu0 0.0
    %1660 = vmatpush1.msra.mxu0 0.0
    %1661 = vmatprep.subr.mxu0 0.0
    %1662 = vmatpush1.msra.mxu0 0.0
    %1663 = vmatprep.subr.mxu0 0.0
    %1664 = vmatpush1.msra.mxu0 0.0
    %1665 = vmatprep.subr.mxu0 0.0
    %1666 = vmatpush1.msra.mxu0 0.0
    %1667 = vmatprep.subr.mxu0 0.0
    %1668 = vmatpush1.msra.mxu0 0.0
    %1669 = vmatprep.subr.mxu0 0.0
    %1670 = vmatpush1.msra.mxu0 0.0
    %1671 = vmatprep.subr.mxu0 0.0
    %1672 = vmatpush1.msra.mxu0 0.0
    %1673 = vmatprep.subr.mxu0 0.0
    %1674 = vmatpush1.msra.mxu0 0.0
    %1675 = vmatprep.subr.mxu0 0.0
    %1676 = vmatpush1.msra.mxu0 0.0
    %1677 = vmatprep.subr.mxu0 0.0
    %1678 = vmatpush1.msra.mxu0 0.0
    %1679 = vmatprep.mubr.f32.mxu0 0.0
    %1680 = vmatmul.mubr.f32.gmra.mrb[0].mxu0 %v1613
    %v1681 = vpop.f32.mrb[0].mxu0
    %v1682 = vadd.f32 0.0, %v1681
    %v1683 = vpop.f32.mrb[0].mxu0
    %v1684 = vadd.f32 0.0, %v1683
    %1685 = vdwg.mxu0
    %s1686 = smul.u32 3, 4
    %s1687 = smul.addr %s1686, 8
    %s1688 = scalar_lea.vmem [#allocation2], %s1687
    %v1689 = vld [vmem:[%s1688] sm:$0xff]
    %v1690 = vld [vmem:[%s1688 + $0x8] sm:$0xff]
    %v1691 = vld [vmem:[%s1688 + $0x10] sm:$0xff]
    %v1692 = vld [vmem:[%s1688 + $0x18] sm:$0xff]
    %v1693 = vpack.c.bf16 %v1682, %v1682
    %v1694 = vld [vmem:[#allocation7] sm:$0xff]
    %v1695 = vld [vmem:[#allocation7 + $0x8] sm:$0xff]
    %v1696 = vld [vmem:[#allocation7 + $0x10] sm:$0xff]
    %v1697 = vld [vmem:[#allocation7 + $0x18] sm:$0xff]
    %v1698 = vld [vmem:[#allocation7 + $0x20] sm:$0xff]
    %v1699 = vld [vmem:[#allocation7 + $0x28] sm:$0xff]
    %v1700 = vld [vmem:[#allocation7 + $0x30] sm:$0xff]
    %v1701 = vld [vmem:[#allocation7 + $0x38] sm:$0xff]
    %v1702 = vld [vmem:[#allocation7 + $0x40] sm:$0xff]
    %v1703 = vld [vmem:[#allocation7 + $0x48] sm:$0xff]
    %v1704 = vld [vmem:[#allocation7 + $0x50] sm:$0xff]
    %v1705 = vld [vmem:[#allocation7 + $0x58] sm:$0xff]
    %v1706 = vld [vmem:[#allocation7 + $0x60] sm:$0xff]
    %v1707 = vld [vmem:[#allocation7 + $0x68] sm:$0xff]
    %v1708 = vld [vmem:[#allocation7 + $0x70] sm:$0xff]
    %v1709 = vld [vmem:[#allocation7 + $0x78] sm:$0xff]
    %v1710 = vld [vmem:[#allocation7 + $0x80] sm:$0xff]
    %v1711 = vld [vmem:[#allocation7 + $0x88] sm:$0xff]
    %v1712 = vld [vmem:[#allocation7 + $0x90] sm:$0xff]
    %v1713 = vld [vmem:[#allocation7 + $0x98] sm:$0xff]
    %v1714 = vld [vmem:[#allocation7 + $0xa0] sm:$0xff]
    %v1715 = vld [vmem:[#allocation7 + $0xa8] sm:$0xff]
    %v1716 = vld [vmem:[#allocation7 + $0xb0] sm:$0xff]
    %v1717 = vld [vmem:[#allocation7 + $0xb8] sm:$0xff]
    %v1718 = vld [vmem:[#allocation7 + $0xc0] sm:$0xff]
    %v1719 = vld [vmem:[#allocation7 + $0xc8] sm:$0xff]
    %v1720 = vld [vmem:[#allocation7 + $0xd0] sm:$0xff]
    %v1721 = vld [vmem:[#allocation7 + $0xd8] sm:$0xff]
    %v1722 = vld [vmem:[#allocation7 + $0xe0] sm:$0xff]
    %v1723 = vld [vmem:[#allocation7 + $0xe8] sm:$0xff]
    %v1724 = vld [vmem:[#allocation7 + $0xf0] sm:$0xff]
    %v1725 = vld [vmem:[#allocation7 + $0xf8] sm:$0xff]
    %v1758 = vunpack.c.l.b16 %v1694
    %v1759 = vunpack.c.h.b16 %v1694
    %v1760 = vunpack.c.l.b16 %v1695
    %v1761 = vunpack.c.h.b16 %v1695
    %v1762 = vunpack.c.l.b16 %v1696
    %v1763 = vunpack.c.h.b16 %v1696
    %v1764 = vunpack.c.l.b16 %v1697
    %v1765 = vunpack.c.h.b16 %v1697
    %v1766 = vunpack.c.l.b16 %v1698
    %v1767 = vunpack.c.h.b16 %v1698
    %v1768 = vunpack.c.l.b16 %v1699
    %v1769 = vunpack.c.h.b16 %v1699
    %v1770 = vunpack.c.l.b16 %v1700
    %v1771 = vunpack.c.h.b16 %v1700
    %v1772 = vunpack.c.l.b16 %v1701
    %v1773 = vunpack.c.h.b16 %v1701
    %v1774 = vunpack.c.l.b16 %v1702
    %v1775 = vunpack.c.h.b16 %v1702
    %v1776 = vunpack.c.l.b16 %v1703
    %v1777 = vunpack.c.h.b16 %v1703
    %v1778 = vunpack.c.l.b16 %v1704
    %v1779 = vunpack.c.h.b16 %v1704
    %v1780 = vunpack.c.l.b16 %v1705
    %v1781 = vunpack.c.h.b16 %v1705
    %v1782 = vunpack.c.l.b16 %v1706
    %v1783 = vunpack.c.h.b16 %v1706
    %v1784 = vunpack.c.l.b16 %v1707
    %v1785 = vunpack.c.h.b16 %v1707
    %v1786 = vunpack.c.l.b16 %v1708
    %v1787 = vunpack.c.h.b16 %v1708
    %v1788 = vunpack.c.l.b16 %v1709
    %v1789 = vunpack.c.h.b16 %v1709
    %v1790 = vunpack.c.l.b16 %v1710
    %v1791 = vunpack.c.h.b16 %v1710
    %v1792 = vunpack.c.l.b16 %v1711
    %v1793 = vunpack.c.h.b16 %v1711
    %v1794 = vunpack.c.l.b16 %v1712
    %v1795 = vunpack.c.h.b16 %v1712
    %v1796 = vunpack.c.l.b16 %v1713
    %v1797 = vunpack.c.h.b16 %v1713
    %v1798 = vunpack.c.l.b16 %v1714
    %v1799 = vunpack.c.h.b16 %v1714
    %v1800 = vunpack.c.l.b16 %v1715
    %v1801 = vunpack.c.h.b16 %v1715
    %v1802 = vunpack.c.l.b16 %v1716
    %v1803 = vunpack.c.h.b16 %v1716
    %v1804 = vunpack.c.l.b16 %v1717
    %v1805 = vunpack.c.h.b16 %v1717
    %v1806 = vunpack.c.l.b16 %v1718
    %v1807 = vunpack.c.h.b16 %v1718
    %v1808 = vunpack.c.l.b16 %v1719
    %v1809 = vunpack.c.h.b16 %v1719
    %v1810 = vunpack.c.l.b16 %v1720
    %v1811 = vunpack.c.h.b16 %v1720
    %v1812 = vunpack.c.l.b16 %v1721
    %v1813 = vunpack.c.h.b16 %v1721
    %v1814 = vunpack.c.l.b16 %v1722
    %v1815 = vunpack.c.h.b16 %v1722
    %v1816 = vunpack.c.l.b16 %v1723
    %v1817 = vunpack.c.h.b16 %v1723
    %v1818 = vunpack.c.l.b16 %v1724
    %v1819 = vunpack.c.h.b16 %v1724
    %v1820 = vunpack.c.l.b16 %v1725
    %v1821 = vunpack.c.h.b16 %v1725
    %v1822 = vpack.c.b16 %v1762, %v1758
    %v1823 = vpack.c.b16 %v1763, %v1759
    %v1824 = vpack.c.b16 %v1764, %v1760
    %v1825 = vpack.c.b16 %v1765, %v1761
    %v1826 = vpack.c.b16 %v1770, %v1766
    %v1827 = vpack.c.b16 %v1771, %v1767
    %v1828 = vpack.c.b16 %v1772, %v1768
    %v1829 = vpack.c.b16 %v1773, %v1769
    %v1830 = vpack.c.b16 %v1778, %v1774
    %v1831 = vpack.c.b16 %v1779, %v1775
    %v1832 = vpack.c.b16 %v1780, %v1776
    %v1833 = vpack.c.b16 %v1781, %v1777
    %v1834 = vpack.c.b16 %v1786, %v1782
    %v1835 = vpack.c.b16 %v1787, %v1783
    %v1836 = vpack.c.b16 %v1788, %v1784
    %v1837 = vpack.c.b16 %v1789, %v1785
    %v1838 = vpack.c.b16 %v1794, %v1790
    %v1839 = vpack.c.b16 %v1795, %v1791
    %v1840 = vpack.c.b16 %v1796, %v1792
    %v1841 = vpack.c.b16 %v1797, %v1793
    %v1842 = vpack.c.b16 %v1802, %v1798
    %v1843 = vpack.c.b16 %v1803, %v1799
    %v1844 = vpack.c.b16 %v1804, %v1800
    %v1845 = vpack.c.b16 %v1805, %v1801
    %v1846 = vpack.c.b16 %v1810, %v1806
    %v1847 = vpack.c.b16 %v1811, %v1807
    %v1848 = vpack.c.b16 %v1812, %v1808
    %v1849 = vpack.c.b16 %v1813, %v1809
    %v1850 = vpack.c.b16 %v1818, %v1814
    %v1851 = vpack.c.b16 %v1819, %v1815
    %v1852 = vpack.c.b16 %v1820, %v1816
    %v1853 = vpack.c.b16 %v1821, %v1817
    %1886 = vmatprep.subr.bf16.mxu0 %v1823
    %1887 = vmatpush1.bf16.msra.mxu0 %v1822
    %1888 = vmatprep.subr.bf16.mxu0 %v1827
    %1889 = vmatpush1.bf16.msra.mxu0 %v1826
    %1890 = vmatprep.subr.bf16.mxu0 %v1831
    %1891 = vmatpush1.bf16.msra.mxu0 %v1830
    %1892 = vmatprep.subr.bf16.mxu0 %v1835
    %1893 = vmatpush1.bf16.msra.mxu0 %v1834
    %1894 = vmatprep.subr.bf16.mxu0 %v1839
    %1895 = vmatpush1.bf16.msra.mxu0 %v1838
    %1896 = vmatprep.subr.bf16.mxu0 %v1843
    %1897 = vmatpush1.bf16.msra.mxu0 %v1842
    %1898 = vmatprep.subr.bf16.mxu0 %v1847
    %1899 = vmatpush1.bf16.msra.mxu0 %v1846
    %1900 = vmatprep.subr.bf16.mxu0 %v1851
    %1901 = vmatpush1.bf16.msra.mxu0 %v1850
    %1902 = vmatprep.subr.bf16.mxu0 0
    %1903 = vmatpush1.bf16.msra.mxu0 0
    %1904 = vmatprep.subr.bf16.mxu0 0
    %1905 = vmatpush1.bf16.msra.mxu0 0
    %1906 = vmatprep.subr.bf16.mxu0 0
    %1907 = vmatpush1.bf16.msra.mxu0 0
    %1908 = vmatprep.subr.bf16.mxu0 0
    %1909 = vmatpush1.bf16.msra.mxu0 0
    %1910 = vmatprep.subr.bf16.mxu0 0
    %1911 = vmatpush1.bf16.msra.mxu0 0
    %1912 = vmatprep.subr.bf16.mxu0 0
    %1913 = vmatpush1.bf16.msra.mxu0 0
    %1914 = vmatprep.subr.bf16.mxu0 0
    %1915 = vmatpush1.bf16.msra.mxu0 0
    %1916 = vmatprep.subr.bf16.mxu0 0
    %1917 = vmatpush1.bf16.msra.mxu0 0
    %1918 = vmatprep.mubr.bf16.mxu0 0
    %1919 = vmatmul.mubr.bf16.gmra.mrb[0].mxu0 %v1693
    %v1920 = vpop.f32.mrb[0].mxu0
    %v1921 = vadd.f32 0.0, %v1920
    %v1922 = vpop.f32.mrb[0].mxu0
    %v1923 = vadd.f32 0.0, %v1922
    %v1924 = vpop.f32.mrb[0].mxu0
    %v1925 = vpop.f32.mrb[0].mxu0
    %1926 = vdwg.mxu0
    %1927 = vmatprep.subr.bf16.mxu0 %v1825
    %1928 = vmatpush1.bf16.msra.mxu0 %v1824
    %1929 = vmatprep.subr.bf16.mxu0 %v1829
    %1930 = vmatpush1.bf16.msra.mxu0 %v1828
    %1931 = vmatprep.subr.bf16.mxu0 %v1833
    %1932 = vmatpush1.bf16.msra.mxu0 %v1832
    %1933 = vmatprep.subr.bf16.mxu0 %v1837
    %1934 = vmatpush1.bf16.msra.mxu0 %v1836
    %1935 = vmatprep.subr.bf16.mxu0 %v1841
    %1936 = vmatpush1.bf16.msra.mxu0 %v1840
    %1937 = vmatprep.subr.bf16.mxu0 %v1845
    %1938 = vmatpush1.bf16.msra.mxu0 %v1844
    %1939 = vmatprep.subr.bf16.mxu0 %v1849
    %1940 = vmatpush1.bf16.msra.mxu0 %v1848
    %1941 = vmatprep.subr.bf16.mxu0 %v1853
    %1942 = vmatpush1.bf16.msra.mxu0 %v1852
    %1943 = vmatprep.subr.bf16.mxu0 0
    %1944 = vmatpush1.bf16.msra.mxu0 0
    %1945 = vmatprep.subr.bf16.mxu0 0
    %1946 = vmatpush1.bf16.msra.mxu0 0
    %1947 = vmatprep.subr.bf16.mxu0 0
    %1948 = vmatpush1.bf16.msra.mxu0 0
    %1949 = vmatprep.subr.bf16.mxu0 0
    %1950 = vmatpush1.bf16.msra.mxu0 0
    %1951 = vmatprep.subr.bf16.mxu0 0
    %1952 = vmatpush1.bf16.msra.mxu0 0
    %1953 = vmatprep.subr.bf16.mxu0 0
    %1954 = vmatpush1.bf16.msra.mxu0 0
    %1955 = vmatprep.subr.bf16.mxu0 0
    %1956 = vmatpush1.bf16.msra.mxu0 0
    %1957 = vmatprep.subr.bf16.mxu0 0
    %1958 = vmatpush1.bf16.msra.mxu0 0
    %1959 = vmatprep.mubr.bf16.mxu0 0
    %1960 = vmatmul.mubr.bf16.gmra.mrb[0].mxu0 %v1693
    %v1961 = vpop.f32.mrb[0].mxu0
    %v1962 = vadd.f32 0.0, %v1961
    %v1963 = vpop.f32.mrb[0].mxu0
    %v1964 = vadd.f32 0.0, %v1963
    %v1965 = vpop.f32.mrb[0].mxu0
    %v1966 = vpop.f32.mrb[0].mxu0
    %1967 = vdwg.mxu0
    %v1968 = vadd.f32 %v1689, %v1921
    %v1969 = vadd.f32 %v1690, %v1923
    %v1970 = vadd.f32 %v1691, %v1962
    %v1971 = vadd.f32 %v1692, %v1964
    %v1972 = vxor.u32 %v1968, 2147483648
    %v1973 = vmul.f32 %v1972, 1.442695
    %v1974 = vpow.pop %v1973
    %v1975 = vadd.f32 %v1974, 1.0
    %v1976 = vrcp.pop %v1975
    %v1977 = vmul.f32 1.0, %v1976
    %v1978 = vxor.u32 %v1969, 2147483648
    %v1979 = vmul.f32 %v1978, 1.442695
    %v1980 = vpow.pop %v1979
    %v1981 = vadd.f32 %v1980, 1.0
    %v1982 = vrcp.pop %v1981
    %v1983 = vmul.f32 1.0, %v1982
    %v1984 = vtanh.pop %v1970
    %v1985 = vxor.u32 %v1971, 2147483648
    %v1986 = vmul.f32 %v1985, 1.442695
    %v1987 = vpow.pop %v1986
    %v1988 = vadd.f32 %v1987, 1.0
    %v1989 = vrcp.pop %v1988
    %v1990 = vmul.f32 1.0, %v1989
    %v1991 = vmul.f32 %v1977, %v1984
    %v1992 = vmul.f32 %v1990, %v1684
    %v1993 = vadd.f32 %v1991, %v1992
    %v1994 = vtanh.pop %v1993
    %v1995 = vmul.f32 %v1983, %v1994
    %1996 = vst [vmem:[#allocation3] sm:$0xff] %v1995
    %1997 = vst [vmem:[#allocation3 + $0x8] sm:$0xff] %v1993
    %s1998 = scalar_lea.vmem [#allocation9], 24
    %1999 = vst [vmem:[%s1998] sm:$0xff] %v1995
    %s2000 = scalar_lea.vmem %s1, 32
    %v2001 = vld [vmem:[%s2000] sm:$0xff]
    %v2002 = vld [vmem:[#allocation3] sm:$0xff]
    %v2003 = vld [vmem:[#allocation3 + $0x8] sm:$0xff]
    %v2005 = vsel %vm436, %v2001, 0
    %2007 = vmatprep.subr.mxu0 %v2003
    %2008 = vmatpush1.msra.mxu0 %v2002
    %2009 = vmatprep.subr.mxu0 0.0
    %2010 = vmatpush1.msra.mxu0 0.0
    %2011 = vmatprep.subr.mxu0 0.0
    %2012 = vmatpush1.msra.mxu0 0.0
    %2013 = vmatprep.subr.mxu0 0.0
    %2014 = vmatpush1.msra.mxu0 0.0
    %2015 = vmatprep.subr.mxu0 0.0
    %2016 = vmatpush1.msra.mxu0 0.0
    %2017 = vmatprep.subr.mxu0 0.0
    %2018 = vmatpush1.msra.mxu0 0.0
    %2019 = vmatprep.subr.mxu0 0.0
    %2020 = vmatpush1.msra.mxu0 0.0
    %2021 = vmatprep.subr.mxu0 0.0
    %2022 = vmatpush1.msra.mxu0 0.0
    %2023 = vmatprep.subr.mxu0 0.0
    %2024 = vmatpush1.msra.mxu0 0.0
    %2025 = vmatprep.subr.mxu0 0.0
    %2026 = vmatpush1.msra.mxu0 0.0
    %2027 = vmatprep.subr.mxu0 0.0
    %2028 = vmatpush1.msra.mxu0 0.0
    %2029 = vmatprep.subr.mxu0 0.0
    %2030 = vmatpush1.msra.mxu0 0.0
    %2031 = vmatprep.subr.mxu0 0.0
    %2032 = vmatpush1.msra.mxu0 0.0
    %2033 = vmatprep.subr.mxu0 0.0
    %2034 = vmatpush1.msra.mxu0 0.0
    %2035 = vmatprep.subr.mxu0 0.0
    %2036 = vmatpush1.msra.mxu0 0.0
    %2037 = vmatprep.subr.mxu0 0.0
    %2038 = vmatpush1.msra.mxu0 0.0
    %2039 = vmatprep.subr.mxu0 0.0
    %2040 = vmatpush1.msra.mxu0 0.0
    %2041 = vmatprep.subr.mxu0 0.0
    %2042 = vmatpush1.msra.mxu0 0.0
    %2043 = vmatprep.subr.mxu0 0.0
    %2044 = vmatpush1.msra.mxu0 0.0
    %2045 = vmatprep.subr.mxu0 0.0
    %2046 = vmatpush1.msra.mxu0 0.0
    %2047 = vmatprep.subr.mxu0 0.0
    %2048 = vmatpush1.msra.mxu0 0.0
    %2049 = vmatprep.subr.mxu0 0.0
    %2050 = vmatpush1.msra.mxu0 0.0
    %2051 = vmatprep.subr.mxu0 0.0
    %2052 = vmatpush1.msra.mxu0 0.0
    %2053 = vmatprep.subr.mxu0 0.0
    %2054 = vmatpush1.msra.mxu0 0.0
    %2055 = vmatprep.subr.mxu0 0.0
    %2056 = vmatpush1.msra.mxu0 0.0
    %2057 = vmatprep.subr.mxu0 0.0
    %2058 = vmatpush1.msra.mxu0 0.0
    %2059 = vmatprep.subr.mxu0 0.0
    %2060 = vmatpush1.msra.mxu0 0.0
    %2061 = vmatprep.subr.mxu0 0.0
    %2062 = vmatpush1.msra.mxu0 0.0
    %2063 = vmatprep.subr.mxu0 0.0
    %2064 = vmatpush1.msra.mxu0 0.0
    %2065 = vmatprep.subr.mxu0 0.0
    %2066 = vmatpush1.msra.mxu0 0.0
    %2067 = vmatprep.subr.mxu0 0.0
    %2068 = vmatpush1.msra.mxu0 0.0
    %2069 = vmatprep.subr.mxu0 0.0
    %2070 = vmatpush1.msra.mxu0 0.0
    %2071 = vmatprep.mubr.f32.mxu0 0.0
    %2072 = vmatmul.mubr.f32.gmra.mrb[0].mxu0 %v2005
    %v2073 = vpop.f32.mrb[0].mxu0
    %v2074 = vadd.f32 0.0, %v2073
    %v2075 = vpop.f32.mrb[0].mxu0
    %v2076 = vadd.f32 0.0, %v2075
    %2077 = vdwg.mxu0
    %s2078 = smul.u32 4, 4
    %s2079 = smul.addr %s2078, 8
    %s2080 = scalar_lea.vmem [#allocation2], %s2079
    %v2081 = vld [vmem:[%s2080] sm:$0xff]
    %v2082 = vld [vmem:[%s2080 + $0x8] sm:$0xff]
    %v2083 = vld [vmem:[%s2080 + $0x10] sm:$0xff]
    %v2084 = vld [vmem:[%s2080 + $0x18] sm:$0xff]
    %v2085 = vpack.c.bf16 %v2074, %v2074
    %v2086 = vld [vmem:[#allocation7] sm:$0xff]
    %v2087 = vld [vmem:[#allocation7 + $0x8] sm:$0xff]
    %v2088 = vld [vmem:[#allocation7 + $0x10] sm:$0xff]
    %v2089 = vld [vmem:[#allocation7 + $0x18] sm:$0xff]
    %v2090 = vld [vmem:[#allocation7 + $0x20] sm:$0xff]
    %v2091 = vld [vmem:[#allocation7 + $0x28] sm:$0xff]
    %v2092 = vld [vmem:[#allocation7 + $0x30] sm:$0xff]
    %v2093 = vld [vmem:[#allocation7 + $0x38] sm:$0xff]
    %v2094 = vld [vmem:[#allocation7 + $0x40] sm:$0xff]
    %v2095 = vld [vmem:[#allocation7 + $0x48] sm:$0xff]
    %v2096 = vld [vmem:[#allocation7 + $0x50] sm:$0xff]
    %v2097 = vld [vmem:[#allocation7 + $0x58] sm:$0xff]
    %v2098 = vld [vmem:[#allocation7 + $0x60] sm:$0xff]
    %v2099 = vld [vmem:[#allocation7 + $0x68] sm:$0xff]
    %v2100 = vld [vmem:[#allocation7 + $0x70] sm:$0xff]
    %v2101 = vld [vmem:[#allocation7 + $0x78] sm:$0xff]
    %v2102 = vld [vmem:[#allocation7 + $0x80] sm:$0xff]
    %v2103 = vld [vmem:[#allocation7 + $0x88] sm:$0xff]
    %v2104 = vld [vmem:[#allocation7 + $0x90] sm:$0xff]
    %v2105 = vld [vmem:[#allocation7 + $0x98] sm:$0xff]
    %v2106 = vld [vmem:[#allocation7 + $0xa0] sm:$0xff]
    %v2107 = vld [vmem:[#allocation7 + $0xa8] sm:$0xff]
    %v2108 = vld [vmem:[#allocation7 + $0xb0] sm:$0xff]
    %v2109 = vld [vmem:[#allocation7 + $0xb8] sm:$0xff]
    %v2110 = vld [vmem:[#allocation7 + $0xc0] sm:$0xff]
    %v2111 = vld [vmem:[#allocation7 + $0xc8] sm:$0xff]
    %v2112 = vld [vmem:[#allocation7 + $0xd0] sm:$0xff]
    %v2113 = vld [vmem:[#allocation7 + $0xd8] sm:$0xff]
    %v2114 = vld [vmem:[#allocation7 + $0xe0] sm:$0xff]
    %v2115 = vld [vmem:[#allocation7 + $0xe8] sm:$0xff]
    %v2116 = vld [vmem:[#allocation7 + $0xf0] sm:$0xff]
    %v2117 = vld [vmem:[#allocation7 + $0xf8] sm:$0xff]
    %v2150 = vunpack.c.l.b16 %v2086
    %v2151 = vunpack.c.h.b16 %v2086
    %v2152 = vunpack.c.l.b16 %v2087
    %v2153 = vunpack.c.h.b16 %v2087
    %v2154 = vunpack.c.l.b16 %v2088
    %v2155 = vunpack.c.h.b16 %v2088
    %v2156 = vunpack.c.l.b16 %v2089
    %v2157 = vunpack.c.h.b16 %v2089
    %v2158 = vunpack.c.l.b16 %v2090
    %v2159 = vunpack.c.h.b16 %v2090
    %v2160 = vunpack.c.l.b16 %v2091
    %v2161 = vunpack.c.h.b16 %v2091
    %v2162 = vunpack.c.l.b16 %v2092
    %v2163 = vunpack.c.h.b16 %v2092
    %v2164 = vunpack.c.l.b16 %v2093
    %v2165 = vunpack.c.h.b16 %v2093
    %v2166 = vunpack.c.l.b16 %v2094
    %v2167 = vunpack.c.h.b16 %v2094
    %v2168 = vunpack.c.l.b16 %v2095
    %v2169 = vunpack.c.h.b16 %v2095
    %v2170 = vunpack.c.l.b16 %v2096
    %v2171 = vunpack.c.h.b16 %v2096
    %v2172 = vunpack.c.l.b16 %v2097
    %v2173 = vunpack.c.h.b16 %v2097
    %v2174 = vunpack.c.l.b16 %v2098
    %v2175 = vunpack.c.h.b16 %v2098
    %v2176 = vunpack.c.l.b16 %v2099
    %v2177 = vunpack.c.h.b16 %v2099
    %v2178 = vunpack.c.l.b16 %v2100
    %v2179 = vunpack.c.h.b16 %v2100
    %v2180 = vunpack.c.l.b16 %v2101
    %v2181 = vunpack.c.h.b16 %v2101
    %v2182 = vunpack.c.l.b16 %v2102
    %v2183 = vunpack.c.h.b16 %v2102
    %v2184 = vunpack.c.l.b16 %v2103
    %v2185 = vunpack.c.h.b16 %v2103
    %v2186 = vunpack.c.l.b16 %v2104
    %v2187 = vunpack.c.h.b16 %v2104
    %v2188 = vunpack.c.l.b16 %v2105
    %v2189 = vunpack.c.h.b16 %v2105
    %v2190 = vunpack.c.l.b16 %v2106
    %v2191 = vunpack.c.h.b16 %v2106
    %v2192 = vunpack.c.l.b16 %v2107
    %v2193 = vunpack.c.h.b16 %v2107
    %v2194 = vunpack.c.l.b16 %v2108
    %v2195 = vunpack.c.h.b16 %v2108
    %v2196 = vunpack.c.l.b16 %v2109
    %v2197 = vunpack.c.h.b16 %v2109
    %v2198 = vunpack.c.l.b16 %v2110
    %v2199 = vunpack.c.h.b16 %v2110
    %v2200 = vunpack.c.l.b16 %v2111
    %v2201 = vunpack.c.h.b16 %v2111
    %v2202 = vunpack.c.l.b16 %v2112
    %v2203 = vunpack.c.h.b16 %v2112
    %v2204 = vunpack.c.l.b16 %v2113
    %v2205 = vunpack.c.h.b16 %v2113
    %v2206 = vunpack.c.l.b16 %v2114
    %v2207 = vunpack.c.h.b16 %v2114
    %v2208 = vunpack.c.l.b16 %v2115
    %v2209 = vunpack.c.h.b16 %v2115
    %v2210 = vunpack.c.l.b16 %v2116
    %v2211 = vunpack.c.h.b16 %v2116
    %v2212 = vunpack.c.l.b16 %v2117
    %v2213 = vunpack.c.h.b16 %v2117
    %v2214 = vpack.c.b16 %v2154, %v2150
    %v2215 = vpack.c.b16 %v2155, %v2151
    %v2216 = vpack.c.b16 %v2156, %v2152
    %v2217 = vpack.c.b16 %v2157, %v2153
    %v2218 = vpack.c.b16 %v2162, %v2158
    %v2219 = vpack.c.b16 %v2163, %v2159
    %v2220 = vpack.c.b16 %v2164, %v2160
    %v2221 = vpack.c.b16 %v2165, %v2161
    %v2222 = vpack.c.b16 %v2170, %v2166
    %v2223 = vpack.c.b16 %v2171, %v2167
    %v2224 = vpack.c.b16 %v2172, %v2168
    %v2225 = vpack.c.b16 %v2173, %v2169
    %v2226 = vpack.c.b16 %v2178, %v2174
    %v2227 = vpack.c.b16 %v2179, %v2175
    %v2228 = vpack.c.b16 %v2180, %v2176
    %v2229 = vpack.c.b16 %v2181, %v2177
    %v2230 = vpack.c.b16 %v2186, %v2182
    %v2231 = vpack.c.b16 %v2187, %v2183
    %v2232 = vpack.c.b16 %v2188, %v2184
    %v2233 = vpack.c.b16 %v2189, %v2185
    %v2234 = vpack.c.b16 %v2194, %v2190
    %v2235 = vpack.c.b16 %v2195, %v2191
    %v2236 = vpack.c.b16 %v2196, %v2192
    %v2237 = vpack.c.b16 %v2197, %v2193
    %v2238 = vpack.c.b16 %v2202, %v2198
    %v2239 = vpack.c.b16 %v2203, %v2199
    %v2240 = vpack.c.b16 %v2204, %v2200
    %v2241 = vpack.c.b16 %v2205, %v2201
    %v2242 = vpack.c.b16 %v2210, %v2206
    %v2243 = vpack.c.b16 %v2211, %v2207
    %v2244 = vpack.c.b16 %v2212, %v2208
    %v2245 = vpack.c.b16 %v2213, %v2209
    %2278 = vmatprep.subr.bf16.mxu0 %v2215
    %2279 = vmatpush1.bf16.msra.mxu0 %v2214
    %2280 = vmatprep.subr.bf16.mxu0 %v2219
    %2281 = vmatpush1.bf16.msra.mxu0 %v2218
    %2282 = vmatprep.subr.bf16.mxu0 %v2223
    %2283 = vmatpush1.bf16.msra.mxu0 %v2222
    %2284 = vmatprep.subr.bf16.mxu0 %v2227
    %2285 = vmatpush1.bf16.msra.mxu0 %v2226
    %2286 = vmatprep.subr.bf16.mxu0 %v2231
    %2287 = vmatpush1.bf16.msra.mxu0 %v2230
    %2288 = vmatprep.subr.bf16.mxu0 %v2235
    %2289 = vmatpush1.bf16.msra.mxu0 %v2234
    %2290 = vmatprep.subr.bf16.mxu0 %v2239
    %2291 = vmatpush1.bf16.msra.mxu0 %v2238
    %2292 = vmatprep.subr.bf16.mxu0 %v2243
    %2293 = vmatpush1.bf16.msra.mxu0 %v2242
    %2294 = vmatprep.subr.bf16.mxu0 0
    %2295 = vmatpush1.bf16.msra.mxu0 0
    %2296 = vmatprep.subr.bf16.mxu0 0
    %2297 = vmatpush1.bf16.msra.mxu0 0
    %2298 = vmatprep.subr.bf16.mxu0 0
    %2299 = vmatpush1.bf16.msra.mxu0 0
    %2300 = vmatprep.subr.bf16.mxu0 0
    %2301 = vmatpush1.bf16.msra.mxu0 0
    %2302 = vmatprep.subr.bf16.mxu0 0
    %2303 = vmatpush1.bf16.msra.mxu0 0
    %2304 = vmatprep.subr.bf16.mxu0 0
    %2305 = vmatpush1.bf16.msra.mxu0 0
    %2306 = vmatprep.subr.bf16.mxu0 0
    %2307 = vmatpush1.bf16.msra.mxu0 0
    %2308 = vmatprep.subr.bf16.mxu0 0
    %2309 = vmatpush1.bf16.msra.mxu0 0
    %2310 = vmatprep.mubr.bf16.mxu0 0
    %2311 = vmatmul.mubr.bf16.gmra.mrb[0].mxu0 %v2085
    %v2312 = vpop.f32.mrb[0].mxu0
    %v2313 = vadd.f32 0.0, %v2312
    %v2314 = vpop.f32.mrb[0].mxu0
    %v2315 = vadd.f32 0.0, %v2314
    %v2316 = vpop.f32.mrb[0].mxu0
    %v2317 = vpop.f32.mrb[0].mxu0
    %2318 = vdwg.mxu0
    %2319 = vmatprep.subr.bf16.mxu0 %v2217
    %2320 = vmatpush1.bf16.msra.mxu0 %v2216
    %2321 = vmatprep.subr.bf16.mxu0 %v2221
    %2322 = vmatpush1.bf16.msra.mxu0 %v2220
    %2323 = vmatprep.subr.bf16.mxu0 %v2225
    %2324 = vmatpush1.bf16.msra.mxu0 %v2224
    %2325 = vmatprep.subr.bf16.mxu0 %v2229
    %2326 = vmatpush1.bf16.msra.mxu0 %v2228
    %2327 = vmatprep.subr.bf16.mxu0 %v2233
    %2328 = vmatpush1.bf16.msra.mxu0 %v2232
    %2329 = vmatprep.subr.bf16.mxu0 %v2237
    %2330 = vmatpush1.bf16.msra.mxu0 %v2236
    %2331 = vmatprep.subr.bf16.mxu0 %v2241
    %2332 = vmatpush1.bf16.msra.mxu0 %v2240
    %2333 = vmatprep.subr.bf16.mxu0 %v2245
    %2334 = vmatpush1.bf16.msra.mxu0 %v2244
    %2335 = vmatprep.subr.bf16.mxu0 0
    %2336 = vmatpush1.bf16.msra.mxu0 0
    %2337 = vmatprep.subr.bf16.mxu0 0
    %2338 = vmatpush1.bf16.msra.mxu0 0
    %2339 = vmatprep.subr.bf16.mxu0 0
    %2340 = vmatpush1.bf16.msra.mxu0 0
    %2341 = vmatprep.subr.bf16.mxu0 0
    %2342 = vmatpush1.bf16.msra.mxu0 0
    %2343 = vmatprep.subr.bf16.mxu0 0
    %2344 = vmatpush1.bf16.msra.mxu0 0
    %2345 = vmatprep.subr.bf16.mxu0 0
    %2346 = vmatpush1.bf16.msra.mxu0 0
    %2347 = vmatprep.subr.bf16.mxu0 0
    %2348 = vmatpush1.bf16.msra.mxu0 0
    %2349 = vmatprep.subr.bf16.mxu0 0
    %2350 = vmatpush1.bf16.msra.mxu0 0
    %2351 = vmatprep.mubr.bf16.mxu0 0
    %2352 = vmatmul.mubr.bf16.gmra.mrb[0].mxu0 %v2085
    %v2353 = vpop.f32.mrb[0].mxu0
    %v2354 = vadd.f32 0.0, %v2353
    %v2355 = vpop.f32.mrb[0].mxu0
    %v2356 = vadd.f32 0.0, %v2355
    %v2357 = vpop.f32.mrb[0].mxu0
    %v2358 = vpop.f32.mrb[0].mxu0
    %2359 = vdwg.mxu0
    %v2360 = vadd.f32 %v2081, %v2313
    %v2361 = vadd.f32 %v2082, %v2315
    %v2362 = vadd.f32 %v2083, %v2354
    %v2363 = vadd.f32 %v2084, %v2356
    %v2364 = vxor.u32 %v2360, 2147483648
    %v2365 = vmul.f32 %v2364, 1.442695
    %v2366 = vpow.pop %v2365
    %v2367 = vadd.f32 %v2366, 1.0
    %v2368 = vrcp.pop %v2367
    %v2369 = vmul.f32 1.0, %v2368
    %v2370 = vxor.u32 %v2361, 2147483648
    %v2371 = vmul.f32 %v2370, 1.442695
    %v2372 = vpow.pop %v2371
    %v2373 = vadd.f32 %v2372, 1.0
    %v2374 = vrcp.pop %v2373
    %v2375 = vmul.f32 1.0, %v2374
    %v2376 = vtanh.pop %v2362
    %v2377 = vxor.u32 %v2363, 2147483648
    %v2378 = vmul.f32 %v2377, 1.442695
    %v2379 = vpow.pop %v2378
    %v2380 = vadd.f32 %v2379, 1.0
    %v2381 = vrcp.pop %v2380
    %v2382 = vmul.f32 1.0, %v2381
    %v2383 = vmul.f32 %v2369, %v2376
    %v2384 = vmul.f32 %v2382, %v2076
    %v2385 = vadd.f32 %v2383, %v2384
    %v2386 = vtanh.pop %v2385
    %v2387 = vmul.f32 %v2375, %v2386
    %2388 = vst [vmem:[#allocation3] sm:$0xff] %v2387
    %2389 = vst [vmem:[#allocation3 + $0x8] sm:$0xff] %v2385
    %s2390 = scalar_lea.vmem [#allocation9], 32
    %2391 = vst [vmem:[%s2390] sm:$0xff] %v2387
    // Predicated region
    $region34: #{tpu_custom_call.1} parent=1 // pred_check
      _
    $region35: #{tpu_custom_call.1} parent=1 // pred_check_branch
      %2393 = sbr.rel (0) target = $region37
    $region36: #{tpu_custom_call.1} parent=1 // pred_region
      %s2395 = ssub.s32 640, 640
      %2396 = vsyncadd [#allocation6], %s2395
      %s2397 = sshll.u32 [#allocation9], 4
      %s2398 = int_to_ptr.vmem [resolvable:$true] %s2397
      %2403 = dma.vmem_to_hbm [thread:$0]  %s2398, 640, %s5, [#allocation6], 128, 128, 8
    $region37: #{tpu_custom_call.1} parent=1 // pred_fallthru
      _
    // Predicated region
    $region38: #{tpu_custom_call.1} parent=1 // pred_check
      _
    $region39: #{tpu_custom_call.1} parent=1 // pred_check_branch
      %2405 = sbr.rel (0) target = $region41
    $region40: #{tpu_custom_call.1} parent=1 // pred_region
      %2406 = dma.done [#allocation6], 640
    $region41: #{tpu_custom_call.1} parent=1 // pred_fallthru
      _
    %2407 = vsyncpa [#allocation5], 1
    %2408 = vsyncpa [#allocation8], 1
    %2409 = vsyncpa [#allocation6], 1

</llo_original>
